<compile_context>
chip_gen: v6e
topology: v6e:2x2x1
jax: 0.10.0
libtpu: 0.0.40
codegen_flags: <defaults>
</compile_context>

<pallas_src>
import functools

import jax
import jax.numpy as jnp
from jax.experimental import pallas as pl
from jax.experimental.pallas import tpu as pltpu

_LANE = 128


def _round_up(n, m):
    return (n + m - 1) // m * m


def _pick_tile(n, candidates):
    """Largest candidate that evenly divides n, else n (single full block)."""
    for c in candidates:
        if n % c == 0:
            return c
    return n


def _lstm_fc_kernel(x_ref, wih_ref, bg_ref, whh_ref, wfc_ref, bfc_ref,
                    out_ref, h_ref, c_ref, gx_ref, *, t_chunk, hidden):
    """One grid step = one (batch tile, time chunk).

    x_ref   : (b_tile, t_chunk, F)  batch-first chunk of the input
    wih_ref : (F, 4H)   W_ih^T, gate order [i, f, o, g]
    bg_ref  : (1, 4H)   b_ih + b_hh, gate order [i, f, o, g]
    whh_ref : (H, 4H)   W_hh^T, gate order [i, f, o, g]
    wfc_ref : (H, Ap)   fc weight^T, lane-padded with zeros
    bfc_ref : (1, Ap)   fc bias, lane-padded
    out_ref : (b_tile, Ap)
    h_ref, c_ref : (b_tile, H) f32 VMEM scratch, carried across time chunks
    gx_ref  : (b_tile, t_chunk, 4H) f32 VMEM scratch (precomputed input gates)
    """
    H = hidden
    b_tile, _, feat = x_ref.shape
    G = 4 * H
    t_idx = pl.program_id(1)

    @pl.when(t_idx == 0)
    def _init():
        h_ref[...] = jnp.zeros_like(h_ref)
        c_ref[...] = jnp.zeros_like(c_ref)

    mxu_dtype = wih_ref.dtype  # f32 by default; bf16 if prepare_params asked for it

    # ---- (1) Hoisted input projection: one big GEMM for the whole chunk ----
    # gx[b*t_chunk + t, :] = x[b, t, :] @ W_ih^T + (b_ih + b_hh)
    x2 = x_ref[...].reshape(b_tile * t_chunk, feat).astype(mxu_dtype)
    gx = jnp.dot(x2, wih_ref[...], preferred_element_type=jnp.float32) + bg_ref[...]
    gx_ref[...] = gx.reshape(b_tile, t_chunk, G)

    # ---- (2) Hoisted recurrent weight: read once, reused by every step ----
    w_hh = whh_ref[...]

    # ---- (3) Recurrence: only h @ W_hh^T remains on the serial chain ----
    h = h_ref[...]
    c = c_ref[...]
    for t in range(t_chunk):  # bounded static unroll (t_chunk <= 16 normally)
        gates = gx_ref[:, t, :] + jnp.dot(h.astype(mxu_dtype), w_hh,
                                          preferred_element_type=jnp.float32)
        # Slab-wise activations: one sigmoid over [i|f|o], one tanh over [g].
        # (For production, pick H as a multiple of 128 so the slab boundaries
        # land on lane-tile boundaries.)
        sig = jax.nn.sigmoid(gates[:, :3 * H])
        g_g = jnp.tanh(gates[:, 3 * H:])
        i_g = sig[:, 0 * H:1 * H]
        f_g = sig[:, 1 * H:2 * H]
        o_g = sig[:, 2 * H:3 * H]
        c = f_g * c + i_g * g_g
        h = o_g * jnp.tanh(c)
    h_ref[...] = h
    c_ref[...] = c

    # ---- (4) fc head on the final hidden state, last chunk only ----
    @pl.when(t_idx == pl.num_programs(1) - 1)
    def _head():
        out_ref[...] = (jnp.dot(h.astype(mxu_dtype), wfc_ref[...],
                                preferred_element_type=jnp.float32)
                        + bfc_ref[...]).astype(out_ref.dtype)


def prepare_params(params, *, mxu_dtype=jnp.float32):
    """One-time parameter prep (off the per-call path).

    Reorders gates [i,f,g,o] -> [i,f,o,g], transposes W_ih/W_hh for the
    row-major GEMMs, merges the two biases, lane-pads the fc head, and
    optionally casts the MXU operands to bf16 (use on v6e/v7x).
    """
    H = params["w_hh"].shape[1]
    A = params["w_fc"].shape[0]
    A_pad = _round_up(A, _LANE)

    perm = jnp.array([0, 1, 3, 2])  # PyTorch [i, f, g, o] -> [i, f, o, g]
    w_ih = params["w_ih"].reshape(4, H, -1)[perm].reshape(4 * H, -1)   # (4H, F)
    w_hh = params["w_hh"].reshape(4, H, H)[perm].reshape(4 * H, H)     # (4H, H)
    bias = (params["b_ih"] + params["b_hh"]).reshape(4, H)[perm].reshape(1, 4 * H)

    w_ih_t = w_ih.T.astype(mxu_dtype)            # (F, 4H)
    w_hh_t = w_hh.T.astype(mxu_dtype)            # (H, 4H)
    b_gates = bias.astype(jnp.float32)           # (1, 4H)

    w_fc_t = jnp.zeros((H, A_pad), mxu_dtype).at[:, :A].set(
        params["w_fc"].T.astype(mxu_dtype))
    b_fc = jnp.zeros((1, A_pad), jnp.float32).at[:, :A].set(
        params["b_fc"].astype(jnp.float32))

    return {"w_ih_t": w_ih_t, "w_hh_t": w_hh_t, "b_gates": b_gates,
            "w_fc_t": w_fc_t, "b_fc": b_fc, "hidden": H, "num_actions": A}


def simple_sequence_model(x, prepped):
    """x: (B, T, F) float32, batch_first — same convention as the PyTorch module."""
    B, T, F = x.shape
    H = prepped["hidden"]
    A = prepped["num_actions"]
    A_pad = prepped["w_fc_t"].shape[1]
    G = 4 * H

    b_tile = _pick_tile(B, (64, 32, 16, 8))   # batch tile (parallel grid axis)
    t_chunk = _pick_tile(T, (16, 8))          # time chunk  (arbitrary grid axis)
    n_b = B // b_tile
    n_t = T // t_chunk

    x = x.astype(jnp.float32)
    kernel = functools.partial(_lstm_fc_kernel, t_chunk=t_chunk, hidden=H)

    in_specs = [
        pl.BlockSpec((b_tile, t_chunk, F), lambda b, t: (b, t, 0)),   # x chunk
        pl.BlockSpec((F, G), lambda b, t: (0, 0)),                    # W_ih^T
        pl.BlockSpec((1, G), lambda b, t: (0, 0)),                    # gate bias
        pl.BlockSpec((H, G), lambda b, t: (0, 0)),                    # W_hh^T
        pl.BlockSpec((H, A_pad), lambda b, t: (0, 0)),                # fc W^T
        pl.BlockSpec((1, A_pad), lambda b, t: (0, 0)),                # fc bias
    ]
    out_spec = pl.BlockSpec((b_tile, A_pad), lambda b, t: (b, 0))
    scratch = [
        pltpu.VMEM((b_tile, H), jnp.float32),            # h carry
        pltpu.VMEM((b_tile, H), jnp.float32),            # c carry
        pltpu.VMEM((b_tile, t_chunk, G), jnp.float32),   # precomputed input gates
    ]

    # VMEM budget: x chunk (double-buffered) + weights + out block + scratch.
    w_isz = jnp.dtype(prepped["w_ih_t"].dtype).itemsize
    bytes_est = (2 * b_tile * t_chunk * F * 4
                 + 2 * ((F + H) * G + H * A_pad) * w_isz
                 + 2 * (G + A_pad) * 4
                 + 2 * b_tile * A_pad * 4
                 + (2 * b_tile * H + b_tile * t_chunk * G) * 4)
    vmem_limit = min(max(2 * int(bytes_est), 4 * 1024 * 1024) + (2 << 20),
                     128 * 1024 * 1024)

    out_pad = pl.pallas_call(
        kernel,
        out_shape=jax.ShapeDtypeStruct((B, A_pad), jnp.float32),
        grid_spec=pltpu.PrefetchScalarGridSpec(
            num_scalar_prefetch=0,
            grid=(n_b, n_t),
            in_specs=in_specs,
            out_specs=out_spec,
            scratch_shapes=scratch),
        compiler_params=pltpu.CompilerParams(
            dimension_semantics=("parallel", "arbitrary"),
            vmem_limit_bytes=vmem_limit),
    )(x, prepped["w_ih_t"], prepped["b_gates"], prepped["w_hh_t"],
      prepped["w_fc_t"], prepped["b_fc"])

    return out_pad[:, :A]


def _reference(x, params):
    """Pure-JAX reference replicating torch.nn.LSTM + Linear semantics."""
    B, T, _ = x.shape
    H = params["w_hh"].shape[1]

    def step(carry, x_t):
        h, c = carry
        gates = (x_t @ params["w_ih"].T + params["b_ih"]
                 + h @ params["w_hh"].T + params["b_hh"])
        i_g = jax.nn.sigmoid(gates[:, 0 * H:1 * H])
        f_g = jax.nn.sigmoid(gates[:, 1 * H:2 * H])
        g_g = jnp.tanh(gates[:, 2 * H:3 * H])
        o_g = jax.nn.sigmoid(gates[:, 3 * H:4 * H])
        c_new = f_g * c + i_g * g_g
        h_new = o_g * jnp.tanh(c_new)
        return (h_new, c_new), h_new

    h0 = jnp.zeros((B, H), jnp.float32)
    c0 = jnp.zeros((B, H), jnp.float32)
    (h_last, _), _ = jax.lax.scan(step, (h0, c0), jnp.transpose(x, (1, 0, 2)))
    return h_last @ params["w_fc"].T + params["b_fc"]


def init_params(key, feature_dim, hidden_dim, num_actions):
    """Deterministic init matching PyTorch param shapes (uniform(-1/sqrt(H), 1/sqrt(H)))."""
    ks = jax.random.split(key, 6)
    bound = 1.0 / jnp.sqrt(hidden_dim)
    u = lambda k, shape: jax.random.uniform(k, shape, jnp.float32, -bound, bound)
    return {
        "w_ih": u(ks[0], (4 * hidden_dim, feature_dim)),
        "w_hh": u(ks[1], (4 * hidden_dim, hidden_dim)),
        "b_ih": u(ks[2], (4 * hidden_dim,)),
        "b_hh": u(ks[3], (4 * hidden_dim,)),
        "w_fc": u(ks[4], (num_actions, hidden_dim)),
        "b_fc": u(ks[5], (num_actions,)),
    }


if __name__ == "__main__":
    B, T, FEATURE_DIM, HIDDEN_DIM, NUM_ACTIONS = 2, 8, 16, 32, 4

    key = jax.random.PRNGKey(0)
    k_x, k_p = jax.random.split(key)
    x = jax.random.normal(k_x, (B, T, FEATURE_DIM), jnp.float32)
    params = init_params(k_p, FEATURE_DIM, HIDDEN_DIM, NUM_ACTIONS)

    prepped = prepare_params(params)          # one-time prep, off the hot path
    out = simple_sequence_model(x, prepped)
    out = jax.block_until_ready(out)

    ref = jax.block_until_ready(_reference(x, params))
    assert out.shape == (B, NUM_ACTIONS)
    assert jnp.allclose(out, ref, atol=1e-4, rtol=1e-4), "mismatch vs reference"

    print("KERNEL_OK")
</pallas_src>

<mosaic_0001>
module attributes {stable_mosaic.version = 11 : i64} {
  func.func @_lstm_fc_kernel(%arg0: i32, %arg1: i32, %arg2: memref<2x8x16xf32, #tpu.memory_space<vmem>>, %arg3: memref<16x128xf32, #tpu.memory_space<vmem>>, %arg4: memref<1x128xf32, #tpu.memory_space<vmem>>, %arg5: memref<32x128xf32, #tpu.memory_space<vmem>>, %arg6: memref<32x128xf32, #tpu.memory_space<vmem>>, %arg7: memref<1x128xf32, #tpu.memory_space<vmem>>, %arg8: memref<2x128xf32, #tpu.memory_space<vmem>>, %arg9: memref<2x32xf32, #tpu.memory_space<vmem>>, %arg10: memref<2x32xf32, #tpu.memory_space<vmem>>, %arg11: memref<2x8x128xf32, #tpu.memory_space<vmem>>) attributes {dimension_semantics = [#tpu.dimension_semantics<parallel>, #tpu.dimension_semantics<arbitrary>], iteration_bounds = array<i64: 1, 1>, scalar_prefetch = 0 : i64, scratch_operands = 3 : i64, tpu.core_type = #tpu.core_type<tc>, window_params = [{transform_indices = @transform_0, window_bounds = array<i64: 2, 8, 16>}, {pipeline_mode = #tpu.pipeline_mode<synchronous>, transform_indices = @transform_1, window_bounds = array<i64: 16, 128>}, {pipeline_mode = #tpu.pipeline_mode<synchronous>, transform_indices = @transform_2, window_bounds = array<i64: 1, 128>}, {pipeline_mode = #tpu.pipeline_mode<synchronous>, transform_indices = @transform_3, window_bounds = array<i64: 32, 128>}, {pipeline_mode = #tpu.pipeline_mode<synchronous>, transform_indices = @transform_4, window_bounds = array<i64: 32, 128>}, {pipeline_mode = #tpu.pipeline_mode<synchronous>, transform_indices = @transform_5, window_bounds = array<i64: 1, 128>}, {transform_indices = @transform_6, window_bounds = array<i64: 2, 128>}]} {
    %c0_i32 = arith.constant 0 : i32
    %0 = arith.cmpi eq, %arg1, %c0_i32 : i32
    %1 = arith.extui %0 : i1 to i32
    %c0_i32_0 = arith.constant 0 : i32
    %2 = arith.cmpi ne, %1, %c0_i32_0 : i32
    scf.if %2 {
      %cst_55 = arith.constant 0.000000e+00 : f32
      %180 = vector.broadcast %cst_55 : f32 to vector<2x32xf32>
      %c0_56 = arith.constant 0 : index
      %c0_57 = arith.constant 0 : index
      %181 = vector.load %arg9[%c0_56, %c0_57] : memref<2x32xf32, #tpu.memory_space<vmem>>, vector<2x32xf32>
      tpu.vector_store %arg9[%c0_56, %c0_57], %180 {strides = array<i32>} : memref<2x32xf32, #tpu.memory_space<vmem>>, vector<2x32xf32>,
      %cst_58 = arith.constant 0.000000e+00 : f32
      %182 = vector.broadcast %cst_58 : f32 to vector<2x32xf32>
      %c0_59 = arith.constant 0 : index
      %c0_60 = arith.constant 0 : index
      %183 = vector.load %arg10[%c0_59, %c0_60] : memref<2x32xf32, #tpu.memory_space<vmem>>, vector<2x32xf32>
      tpu.vector_store %arg10[%c0_59, %c0_60], %182 {strides = array<i32>} : memref<2x32xf32, #tpu.memory_space<vmem>>, vector<2x32xf32>,
    } else {
    }
    %c0 = arith.constant 0 : index
    %c0_1 = arith.constant 0 : index
    %c0_2 = arith.constant 0 : index
    %3 = vector.load %arg2[%c0, %c0_1, %c0_2] : memref<2x8x16xf32, #tpu.memory_space<vmem>>, vector<2x8x16xf32>
    %4 = vector.shape_cast %3 : vector<2x8x16xf32> to vector<16x16xf32>
    %c0_3 = arith.constant 0 : index
    %c0_4 = arith.constant 0 : index
    %5 = vector.load %arg3[%c0_3, %c0_4] : memref<16x128xf32, #tpu.memory_space<vmem>>, vector<16x128xf32>
    %cst = arith.constant dense<0.000000e+00> : vector<16x128xf32>
    %6 = tpu.matmul %4, %5, %cst {dimension_numbers = #tpu.dot_dimension_numbers<[1], [0], [0], [1], [0, 0, 1, 1], [], []>} : vector<16x16xf32>, vector<16x128xf32>, vector<16x128xf32> -> vector<16x128xf32>
    %c0_5 = arith.constant 0 : index
    %c0_6 = arith.constant 0 : index
    %7 = vector.load %arg4[%c0_5, %c0_6] : memref<1x128xf32, #tpu.memory_space<vmem>>, vector<1x128xf32>
    %8 = vector.broadcast %7 : vector<1x128xf32> to vector<16x128xf32>
    %9 = arith.addf %6, %8 : vector<16x128xf32>
    %10 = vector.shape_cast %9 : vector<16x128xf32> to vector<2x8x128xf32>
    %c0_7 = arith.constant 0 : index
    %c0_8 = arith.constant 0 : index
    %c0_9 = arith.constant 0 : index
    %11 = vector.load %arg11[%c0_7, %c0_8, %c0_9] : memref<2x8x128xf32, #tpu.memory_space<vmem>>, vector<2x8x128xf32>
    tpu.vector_store %arg11[%c0_7, %c0_8, %c0_9], %10 {strides = array<i32>} : memref<2x8x128xf32, #tpu.memory_space<vmem>>, vector<2x8x128xf32>,
    %c0_10 = arith.constant 0 : index
    %c0_11 = arith.constant 0 : index
    %12 = vector.load %arg5[%c0_10, %c0_11] : memref<32x128xf32, #tpu.memory_space<vmem>>, vector<32x128xf32>
    %c0_12 = arith.constant 0 : index
    %c0_13 = arith.constant 0 : index
    %13 = vector.load %arg9[%c0_12, %c0_13] : memref<2x32xf32, #tpu.memory_space<vmem>>, vector<2x32xf32>
    %c0_14 = arith.constant 0 : index
    %c0_15 = arith.constant 0 : index
    %14 = vector.load %arg10[%c0_14, %c0_15] : memref<2x32xf32, #tpu.memory_space<vmem>>, vector<2x32xf32>
    %c0_16 = arith.constant 0 : index
    %c0_17 = arith.constant 0 : index
    %c0_18 = arith.constant 0 : index
    %15 = vector.load %arg11[%c0_16, %c0_17, %c0_18] : memref<2x8x128xf32, #tpu.memory_space<vmem>>, vector<2x1x128xf32>
    %16 = vector.shape_cast %15 : vector<2x1x128xf32> to vector<2x128xf32>
    %cst_19 = arith.constant dense<0.000000e+00> : vector<2x128xf32>
    %17 = tpu.matmul %13, %12, %cst_19 {dimension_numbers = #tpu.dot_dimension_numbers<[1], [0], [0], [1], [0, 0, 1, 1], [], []>} : vector<2x32xf32>, vector<32x128xf32>, vector<2x128xf32> -> vector<2x128xf32>
    %18 = arith.addf %16, %17 : vector<2x128xf32>
    %19 = vector.extract_strided_slice %18 {offsets = [0, 0], sizes = [2, 96], strides = [1, 1]} : vector<2x128xf32> to vector<2x96xf32>
    %20 = arith.negf %19 : vector<2x96xf32>
    %21 = math.exp %20 : vector<2x96xf32>
    %cst_20 = arith.constant 1.000000e+00 : f32
    %22 = vector.broadcast %cst_20 : f32 to vector<2x96xf32>
    %23 = arith.addf %22, %21 : vector<2x96xf32>
    %24 = arith.divf %22, %23 : vector<2x96xf32>
    %25 = vector.extract_strided_slice %18 {offsets = [0, 96], sizes = [2, 32], strides = [1, 1]} : vector<2x128xf32> to vector<2x32xf32>
    %26 = math.tanh %25 : vector<2x32xf32>
    %27 = vector.extract_strided_slice %24 {offsets = [0, 0], sizes = [2, 32], strides = [1, 1]} : vector<2x96xf32> to vector<2x32xf32>
    %28 = vector.extract_strided_slice %24 {offsets = [0, 32], sizes = [2, 32], strides = [1, 1]} : vector<2x96xf32> to vector<2x32xf32>
    %29 = vector.extract_strided_slice %24 {offsets = [0, 64], sizes = [2, 32], strides = [1, 1]} : vector<2x96xf32> to vector<2x32xf32>
    %30 = arith.mulf %28, %14 : vector<2x32xf32>
    %31 = arith.mulf %27, %26 : vector<2x32xf32>
    %32 = arith.addf %30, %31 : vector<2x32xf32>
    %33 = math.tanh %32 : vector<2x32xf32>
    %34 = arith.mulf %29, %33 : vector<2x32xf32>
    %c0_21 = arith.constant 0 : index
    %c1 = arith.constant 1 : index
    %c0_22 = arith.constant 0 : index
    %35 = vector.load %arg11[%c0_21, %c1, %c0_22] : memref<2x8x128xf32, #tpu.memory_space<vmem>>, vector<2x1x128xf32>
    %36 = vector.shape_cast %35 : vector<2x1x128xf32> to vector<2x128xf32>
    %cst_23 = arith.constant dense<0.000000e+00> : vector<2x128xf32>
    %37 = tpu.matmul %34, %12, %cst_23 {dimension_numbers = #tpu.dot_dimension_numbers<[1], [0], [0], [1], [0, 0, 1, 1], [], []>} : vector<2x32xf32>, vector<32x128xf32>, vector<2x128xf32> -> vector<2x128xf32>
    %38 = arith.addf %36, %37 : vector<2x128xf32>
    %39 = vector.extract_strided_slice %38 {offsets = [0, 0], sizes = [2, 96], strides = [1, 1]} : vector<2x128xf32> to vector<2x96xf32>
    %40 = arith.negf %39 : vector<2x96xf32>
    %41 = math.exp %40 : vector<2x96xf32>
    %cst_24 = arith.constant 1.000000e+00 : f32
    %42 = vector.broadcast %cst_24 : f32 to vector<2x96xf32>
    %43 = arith.addf %42, %41 : vector<2x96xf32>
    %44 = arith.divf %42, %43 : vector<2x96xf32>
    %45 = vector.extract_strided_slice %38 {offsets = [0, 96], sizes = [2, 32], strides = [1, 1]} : vector<2x128xf32> to vector<2x32xf32>
    %46 = math.tanh %45 : vector<2x32xf32>
    %47 = vector.extract_strided_slice %44 {offsets = [0, 0], sizes = [2, 32], strides = [1, 1]} : vector<2x96xf32> to vector<2x32xf32>
    %48 = vector.extract_strided_slice %44 {offsets = [0, 32], sizes = [2, 32], strides = [1, 1]} : vector<2x96xf32> to vector<2x32xf32>
    %49 = vector.extract_strided_slice %44 {offsets = [0, 64], sizes = [2, 32], strides = [1, 1]} : vector<2x96xf32> to vector<2x32xf32>
    %50 = arith.mulf %48, %32 : vector<2x32xf32>
    %51 = arith.mulf %47, %46 : vector<2x32xf32>
    %52 = arith.addf %50, %51 : vector<2x32xf32>
    %53 = math.tanh %52 : vector<2x32xf32>
    %54 = arith.mulf %49, %53 : vector<2x32xf32>
    %c0_25 = arith.constant 0 : index
    %c2 = arith.constant 2 : index
    %c0_26 = arith.constant 0 : index
    %55 = vector.load %arg11[%c0_25, %c2, %c0_26] : memref<2x8x128xf32, #tpu.memory_space<vmem>>, vector<2x1x128xf32>
    %56 = vector.shape_cast %55 : vector<2x1x128xf32> to vector<2x128xf32>
    %cst_27 = arith.constant dense<0.000000e+00> : vector<2x128xf32>
    %57 = tpu.matmul %54, %12, %cst_27 {dimension_numbers = #tpu.dot_dimension_numbers<[1], [0], [0], [1], [0, 0, 1, 1], [], []>} : vector<2x32xf32>, vector<32x128xf32>, vector<2x128xf32> -> vector<2x128xf32>
    %58 = arith.addf %56, %57 : vector<2x128xf32>
    %59 = vector.extract_strided_slice %58 {offsets = [0, 0], sizes = [2, 96], strides = [1, 1]} : vector<2x128xf32> to vector<2x96xf32>
    %60 = arith.negf %59 : vector<2x96xf32>
    %61 = math.exp %60 : vector<2x96xf32>
    %cst_28 = arith.constant 1.000000e+00 : f32
    %62 = vector.broadcast %cst_28 : f32 to vector<2x96xf32>
    %63 = arith.addf %62, %61 : vector<2x96xf32>
    %64 = arith.divf %62, %63 : vector<2x96xf32>
    %65 = vector.extract_strided_slice %58 {offsets = [0, 96], sizes = [2, 32], strides = [1, 1]} : vector<2x128xf32> to vector<2x32xf32>
    %66 = math.tanh %65 : vector<2x32xf32>
    %67 = vector.extract_strided_slice %64 {offsets = [0, 0], sizes = [2, 32], strides = [1, 1]} : vector<2x96xf32> to vector<2x32xf32>
    %68 = vector.extract_strided_slice %64 {offsets = [0, 32], sizes = [2, 32], strides = [1, 1]} : vector<2x96xf32> to vector<2x32xf32>
    %69 = vector.extract_strided_slice %64 {offsets = [0, 64], sizes = [2, 32], strides = [1, 1]} : vector<2x96xf32> to vector<2x32xf32>
    %70 = arith.mulf %68, %52 : vector<2x32xf32>
    %71 = arith.mulf %67, %66 : vector<2x32xf32>
    %72 = arith.addf %70, %71 : vector<2x32xf32>
    %73 = math.tanh %72 : vector<2x32xf32>
    %74 = arith.mulf %69, %73 : vector<2x32xf32>
    %c0_29 = arith.constant 0 : index
    %c3 = arith.constant 3 : index
    %c0_30 = arith.constant 0 : index
    %75 = vector.load %arg11[%c0_29, %c3, %c0_30] : memref<2x8x128xf32, #tpu.memory_space<vmem>>, vector<2x1x128xf32>
    %76 = vector.shape_cast %75 : vector<2x1x128xf32> to vector<2x128xf32>
    %cst_31 = arith.constant dense<0.000000e+00> : vector<2x128xf32>
    %77 = tpu.matmul %74, %12, %cst_31 {dimension_numbers = #tpu.dot_dimension_numbers<[1], [0], [0], [1], [0, 0, 1, 1], [], []>} : vector<2x32xf32>, vector<32x128xf32>, vector<2x128xf32> -> vector<2x128xf32>
    %78 = arith.addf %76, %77 : vector<2x128xf32>
    %79 = vector.extract_strided_slice %78 {offsets = [0, 0], sizes = [2, 96], strides = [1, 1]} : vector<2x128xf32> to vector<2x96xf32>
    %80 = arith.negf %79 : vector<2x96xf32>
    %81 = math.exp %80 : vector<2x96xf32>
    %cst_32 = arith.constant 1.000000e+00 : f32
    %82 = vector.broadcast %cst_32 : f32 to vector<2x96xf32>
    %83 = arith.addf %82, %81 : vector<2x96xf32>
    %84 = arith.divf %82, %83 : vector<2x96xf32>
    %85 = vector.extract_strided_slice %78 {offsets = [0, 96], sizes = [2, 32], strides = [1, 1]} : vector<2x128xf32> to vector<2x32xf32>
    %86 = math.tanh %85 : vector<2x32xf32>
    %87 = vector.extract_strided_slice %84 {offsets = [0, 0], sizes = [2, 32], strides = [1, 1]} : vector<2x96xf32> to vector<2x32xf32>
    %88 = vector.extract_strided_slice %84 {offsets = [0, 32], sizes = [2, 32], strides = [1, 1]} : vector<2x96xf32> to vector<2x32xf32>
    %89 = vector.extract_strided_slice %84 {offsets = [0, 64], sizes = [2, 32], strides = [1, 1]} : vector<2x96xf32> to vector<2x32xf32>
    %90 = arith.mulf %88, %72 : vector<2x32xf32>
    %91 = arith.mulf %87, %86 : vector<2x32xf32>
    %92 = arith.addf %90, %91 : vector<2x32xf32>
    %93 = math.tanh %92 : vector<2x32xf32>
    %94 = arith.mulf %89, %93 : vector<2x32xf32>
    %c0_33 = arith.constant 0 : index
    %c4 = arith.constant 4 : index
    %c0_34 = arith.constant 0 : index
    %95 = vector.load %arg11[%c0_33, %c4, %c0_34] : memref<2x8x128xf32, #tpu.memory_space<vmem>>, vector<2x1x128xf32>
    %96 = vector.shape_cast %95 : vector<2x1x128xf32> to vector<2x128xf32>
    %cst_35 = arith.constant dense<0.000000e+00> : vector<2x128xf32>
    %97 = tpu.matmul %94, %12, %cst_35 {dimension_numbers = #tpu.dot_dimension_numbers<[1], [0], [0], [1], [0, 0, 1, 1], [], []>} : vector<2x32xf32>, vector<32x128xf32>, vector<2x128xf32> -> vector<2x128xf32>
    %98 = arith.addf %96, %97 : vector<2x128xf32>
    %99 = vector.extract_strided_slice %98 {offsets = [0, 0], sizes = [2, 96], strides = [1, 1]} : vector<2x128xf32> to vector<2x96xf32>
    %100 = arith.negf %99 : vector<2x96xf32>
    %101 = math.exp %100 : vector<2x96xf32>
    %cst_36 = arith.constant 1.000000e+00 : f32
    %102 = vector.broadcast %cst_36 : f32 to vector<2x96xf32>
    %103 = arith.addf %102, %101 : vector<2x96xf32>
    %104 = arith.divf %102, %103 : vector<2x96xf32>
    %105 = vector.extract_strided_slice %98 {offsets = [0, 96], sizes = [2, 32], strides = [1, 1]} : vector<2x128xf32> to vector<2x32xf32>
    %106 = math.tanh %105 : vector<2x32xf32>
    %107 = vector.extract_strided_slice %104 {offsets = [0, 0], sizes = [2, 32], strides = [1, 1]} : vector<2x96xf32> to vector<2x32xf32>
    %108 = vector.extract_strided_slice %104 {offsets = [0, 32], sizes = [2, 32], strides = [1, 1]} : vector<2x96xf32> to vector<2x32xf32>
    %109 = vector.extract_strided_slice %104 {offsets = [0, 64], sizes = [2, 32], strides = [1, 1]} : vector<2x96xf32> to vector<2x32xf32>
    %110 = arith.mulf %108, %92 : vector<2x32xf32>
    %111 = arith.mulf %107, %106 : vector<2x32xf32>
    %112 = arith.addf %110, %111 : vector<2x32xf32>
    %113 = math.tanh %112 : vector<2x32xf32>
    %114 = arith.mulf %109, %113 : vector<2x32xf32>
    %c0_37 = arith.constant 0 : index
    %c5 = arith.constant 5 : index
    %c0_38 = arith.constant 0 : index
    %115 = vector.load %arg11[%c0_37, %c5, %c0_38] : memref<2x8x128xf32, #tpu.memory_space<vmem>>, vector<2x1x128xf32>
    %116 = vector.shape_cast %115 : vector<2x1x128xf32> to vector<2x128xf32>
    %cst_39 = arith.constant dense<0.000000e+00> : vector<2x128xf32>
    %117 = tpu.matmul %114, %12, %cst_39 {dimension_numbers = #tpu.dot_dimension_numbers<[1], [0], [0], [1], [0, 0, 1, 1], [], []>} : vector<2x32xf32>, vector<32x128xf32>, vector<2x128xf32> -> vector<2x128xf32>
    %118 = arith.addf %116, %117 : vector<2x128xf32>
    %119 = vector.extract_strided_slice %118 {offsets = [0, 0], sizes = [2, 96], strides = [1, 1]} : vector<2x128xf32> to vector<2x96xf32>
    %120 = arith.negf %119 : vector<2x96xf32>
    %121 = math.exp %120 : vector<2x96xf32>
    %cst_40 = arith.constant 1.000000e+00 : f32
    %122 = vector.broadcast %cst_40 : f32 to vector<2x96xf32>
    %123 = arith.addf %122, %121 : vector<2x96xf32>
    %124 = arith.divf %122, %123 : vector<2x96xf32>
    %125 = vector.extract_strided_slice %118 {offsets = [0, 96], sizes = [2, 32], strides = [1, 1]} : vector<2x128xf32> to vector<2x32xf32>
    %126 = math.tanh %125 : vector<2x32xf32>
    %127 = vector.extract_strided_slice %124 {offsets = [0, 0], sizes = [2, 32], strides = [1, 1]} : vector<2x96xf32> to vector<2x32xf32>
    %128 = vector.extract_strided_slice %124 {offsets = [0, 32], sizes = [2, 32], strides = [1, 1]} : vector<2x96xf32> to vector<2x32xf32>
    %129 = vector.extract_strided_slice %124 {offsets = [0, 64], sizes = [2, 32], strides = [1, 1]} : vector<2x96xf32> to vector<2x32xf32>
    %130 = arith.mulf %128, %112 : vector<2x32xf32>
    %131 = arith.mulf %127, %126 : vector<2x32xf32>
    %132 = arith.addf %130, %131 : vector<2x32xf32>
    %133 = math.tanh %132 : vector<2x32xf32>
    %134 = arith.mulf %129, %133 : vector<2x32xf32>
    %c0_41 = arith.constant 0 : index
    %c6 = arith.constant 6 : index
    %c0_42 = arith.constant 0 : index
    %135 = vector.load %arg11[%c0_41, %c6, %c0_42] : memref<2x8x128xf32, #tpu.memory_space<vmem>>, vector<2x1x128xf32>
    %136 = vector.shape_cast %135 : vector<2x1x128xf32> to vector<2x128xf32>
    %cst_43 = arith.constant dense<0.000000e+00> : vector<2x128xf32>
    %137 = tpu.matmul %134, %12, %cst_43 {dimension_numbers = #tpu.dot_dimension_numbers<[1], [0], [0], [1], [0, 0, 1, 1], [], []>} : vector<2x32xf32>, vector<32x128xf32>, vector<2x128xf32> -> vector<2x128xf32>
    %138 = arith.addf %136, %137 : vector<2x128xf32>
    %139 = vector.extract_strided_slice %138 {offsets = [0, 0], sizes = [2, 96], strides = [1, 1]} : vector<2x128xf32> to vector<2x96xf32>
    %140 = arith.negf %139 : vector<2x96xf32>
    %141 = math.exp %140 : vector<2x96xf32>
    %cst_44 = arith.constant 1.000000e+00 : f32
    %142 = vector.broadcast %cst_44 : f32 to vector<2x96xf32>
    %143 = arith.addf %142, %141 : vector<2x96xf32>
    %144 = arith.divf %142, %143 : vector<2x96xf32>
    %145 = vector.extract_strided_slice %138 {offsets = [0, 96], sizes = [2, 32], strides = [1, 1]} : vector<2x128xf32> to vector<2x32xf32>
    %146 = math.tanh %145 : vector<2x32xf32>
    %147 = vector.extract_strided_slice %144 {offsets = [0, 0], sizes = [2, 32], strides = [1, 1]} : vector<2x96xf32> to vector<2x32xf32>
    %148 = vector.extract_strided_slice %144 {offsets = [0, 32], sizes = [2, 32], strides = [1, 1]} : vector<2x96xf32> to vector<2x32xf32>
    %149 = vector.extract_strided_slice %144 {offsets = [0, 64], sizes = [2, 32], strides = [1, 1]} : vector<2x96xf32> to vector<2x32xf32>
    %150 = arith.mulf %148, %132 : vector<2x32xf32>
    %151 = arith.mulf %147, %146 : vector<2x32xf32>
    %152 = arith.addf %150, %151 : vector<2x32xf32>
    %153 = math.tanh %152 : vector<2x32xf32>
    %154 = arith.mulf %149, %153 : vector<2x32xf32>
    %c0_45 = arith.constant 0 : index
    %c7 = arith.constant 7 : index
    %c0_46 = arith.constant 0 : index
    %155 = vector.load %arg11[%c0_45, %c7, %c0_46] : memref<2x8x128xf32, #tpu.memory_space<vmem>>, vector<2x1x128xf32>
    %156 = vector.shape_cast %155 : vector<2x1x128xf32> to vector<2x128xf32>
    %cst_47 = arith.constant dense<0.000000e+00> : vector<2x128xf32>
    %157 = tpu.matmul %154, %12, %cst_47 {dimension_numbers = #tpu.dot_dimension_numbers<[1], [0], [0], [1], [0, 0, 1, 1], [], []>} : vector<2x32xf32>, vector<32x128xf32>, vector<2x128xf32> -> vector<2x128xf32>
    %158 = arith.addf %156, %157 : vector<2x128xf32>
    %159 = vector.extract_strided_slice %158 {offsets = [0, 0], sizes = [2, 96], strides = [1, 1]} : vector<2x128xf32> to vector<2x96xf32>
    %160 = arith.negf %159 : vector<2x96xf32>
    %161 = math.exp %160 : vector<2x96xf32>
    %cst_48 = arith.constant 1.000000e+00 : f32
    %162 = vector.broadcast %cst_48 : f32 to vector<2x96xf32>
    %163 = arith.addf %162, %161 : vector<2x96xf32>
    %164 = arith.divf %162, %163 : vector<2x96xf32>
    %165 = vector.extract_strided_slice %158 {offsets = [0, 96], sizes = [2, 32], strides = [1, 1]} : vector<2x128xf32> to vector<2x32xf32>
    %166 = math.tanh %165 : vector<2x32xf32>
    %167 = vector.extract_strided_slice %164 {offsets = [0, 0], sizes = [2, 32], strides = [1, 1]} : vector<2x96xf32> to vector<2x32xf32>
    %168 = vector.extract_strided_slice %164 {offsets = [0, 32], sizes = [2, 32], strides = [1, 1]} : vector<2x96xf32> to vector<2x32xf32>
    %169 = vector.extract_strided_slice %164 {offsets = [0, 64], sizes = [2, 32], strides = [1, 1]} : vector<2x96xf32> to vector<2x32xf32>
    %170 = arith.mulf %168, %152 : vector<2x32xf32>
    %171 = arith.mulf %167, %166 : vector<2x32xf32>
    %172 = arith.addf %170, %171 : vector<2x32xf32>
    %173 = math.tanh %172 : vector<2x32xf32>
    %174 = arith.mulf %169, %173 : vector<2x32xf32>
    %c0_49 = arith.constant 0 : index
    %c0_50 = arith.constant 0 : index
    %175 = vector.load %arg9[%c0_49, %c0_50] : memref<2x32xf32, #tpu.memory_space<vmem>>, vector<2x32xf32>
    tpu.vector_store %arg9[%c0_49, %c0_50], %174 {strides = array<i32>} : memref<2x32xf32, #tpu.memory_space<vmem>>, vector<2x32xf32>,
    %c0_51 = arith.constant 0 : index
    %c0_52 = arith.constant 0 : index
    %176 = vector.load %arg10[%c0_51, %c0_52] : memref<2x32xf32, #tpu.memory_space<vmem>>, vector<2x32xf32>
    tpu.vector_store %arg10[%c0_51, %c0_52], %172 {strides = array<i32>} : memref<2x32xf32, #tpu.memory_space<vmem>>, vector<2x32xf32>,
    %c0_i32_53 = arith.constant 0 : i32
    %177 = arith.cmpi eq, %arg1, %c0_i32_53 : i32
    %178 = arith.extui %177 : i1 to i32
    %c0_i32_54 = arith.constant 0 : i32
    %179 = arith.cmpi ne, %178, %c0_i32_54 : i32
    scf.if %179 {
      %c0_55 = arith.constant 0 : index
      %c0_56 = arith.constant 0 : index
      %180 = vector.load %arg6[%c0_55, %c0_56] : memref<32x128xf32, #tpu.memory_space<vmem>>, vector<32x128xf32>
      %cst_57 = arith.constant dense<0.000000e+00> : vector<2x128xf32>
      %181 = tpu.matmul %174, %180, %cst_57 {dimension_numbers = #tpu.dot_dimension_numbers<[1], [0], [0], [1], [0, 0, 1, 1], [], []>} : vector<2x32xf32>, vector<32x128xf32>, vector<2x128xf32> -> vector<2x128xf32>
      %c0_58 = arith.constant 0 : index
      %c0_59 = arith.constant 0 : index
      %182 = vector.load %arg7[%c0_58, %c0_59] : memref<1x128xf32, #tpu.memory_space<vmem>>, vector<1x128xf32>
      %183 = vector.broadcast %182 : vector<1x128xf32> to vector<2x128xf32>
      %184 = arith.addf %181, %183 : vector<2x128xf32>
      %c0_60 = arith.constant 0 : index
      %c0_61 = arith.constant 0 : index
      %185 = vector.load %arg8[%c0_60, %c0_61] : memref<2x128xf32, #tpu.memory_space<vmem>>, vector<2x128xf32>
      tpu.vector_store %arg8[%c0_60, %c0_61], %184 {strides = array<i32>} : memref<2x128xf32, #tpu.memory_space<vmem>>, vector<2x128xf32>,
    } else {
    }
    return
  }
  func.func @transform_0(%arg0: i32, %arg1: i32) -> (i32, i32, i32) {
    %c0_i32 = arith.constant 0 : i32
    %c0_i32_0 = arith.constant 0 : i32
    return %arg0, %arg1, %c0_i32 : i32, i32, i32
  }
  func.func @transform_1(%arg0: i32, %arg1: i32) -> (i32, i32) {
    %c0_i32 = arith.constant 0 : i32
    %c0_i32_0 = arith.constant 0 : i32
    %c0_i32_1 = arith.constant 0 : i32
    return %c0_i32, %c0_i32_0 : i32, i32
  }
  func.func @transform_2(%arg0: i32, %arg1: i32) -> (i32, i32) {
    %c0_i32 = arith.constant 0 : i32
    %c0_i32_0 = arith.constant 0 : i32
    %c0_i32_1 = arith.constant 0 : i32
    return %c0_i32, %c0_i32_0 : i32, i32
  }
  func.func @transform_3(%arg0: i32, %arg1: i32) -> (i32, i32) {
    %c0_i32 = arith.constant 0 : i32
    %c0_i32_0 = arith.constant 0 : i32
    %c0_i32_1 = arith.constant 0 : i32
    return %c0_i32, %c0_i32_0 : i32, i32
  }
  func.func @transform_4(%arg0: i32, %arg1: i32) -> (i32, i32) {
    %c0_i32 = arith.constant 0 : i32
    %c0_i32_0 = arith.constant 0 : i32
    %c0_i32_1 = arith.constant 0 : i32
    return %c0_i32, %c0_i32_0 : i32, i32
  }
  func.func @transform_5(%arg0: i32, %arg1: i32) -> (i32, i32) {
    %c0_i32 = arith.constant 0 : i32
    %c0_i32_0 = arith.constant 0 : i32
    %c0_i32_1 = arith.constant 0 : i32
    return %c0_i32, %c0_i32_0 : i32, i32
  }
  func.func @transform_6(%arg0: i32, %arg1: i32) -> (i32, i32) {
    %c0_i32 = arith.constant 0 : i32
    %c0_i32_0 = arith.constant 0 : i32
    return %arg0, %c0_i32 : i32, i32
  }
}

</mosaic_0001>

<llo_original>
// kernel: tpu_custom_call.1
$region0: #{tpu_custom_call.1}
  #allocation0 [shape = 'u32[]', space=smem, size = 0x4, offset = 0x4, fixed_abs, tag = 'smem constant byte address 0x4 - core index']
  #allocation1 [shape = 'u32[144,128]{1,0:T(1,128)}', space=vmem, size = 0x12000, scoped, tag = 'internal scratch']
  #allocation2 [shape = 'f32[2,32]{1,0:T(2,128)}', space=vmem, size = 0x400, scoped, tag = 'scratch operand']
  #allocation3 [shape = 'f32[2,32]{1,0:T(2,128)}', space=vmem, size = 0x400, scoped, tag = 'scratch operand']
  #allocation4 [shape = 'f32[2,8,128]{2,1,0:T(8,128)}', space=vmem, size = 0x2000, scoped, tag = 'scratch operand']
  %s0 = inlined_call_operand.hbm [shape: f32[2,8,16], index: 0, kind: input, shape index: {}]
  %s1 = inlined_call_operand.hbm [shape: f32[16,128], index: 1, kind: input, shape index: {}]
  %s2 = inlined_call_operand.vmem [shape: f32[1,128], index: 2, kind: input, shape index: {}]
  %s3 = inlined_call_operand.hbm [shape: f32[32,128], index: 3, kind: input, shape index: {}]
  %s4 = inlined_call_operand.hbm [shape: f32[32,128], index: 4, kind: input, shape index: {}]
  %s5 = inlined_call_operand.vmem [shape: f32[1,128], index: 5, kind: input, shape index: {}]
  %s6 = inlined_call_operand.hbm [shape: f32[2,128], index: 6, kind: output, shape index: {}]
  %s7 = sld [smem:[#allocation0]]
  $region58: #{tpu_custom_call.1} parent=0
    _
  %s9 = ssub.s32 1, %s7
  %s10 = scalar_select 0, %s9, %s7
  $region1: #{tpu_custom_call.1} parent=0
    #allocation5 [shape = 'u8[8192]{0}', space=vmem, size = 0x2000, scoped, tag = 'input window, operand 0, single buffered']
    #allocation6 [shape = 's32[1]{0}', space=sflag, size = 0x4, scoped, tag = 'scoped memory for tpu_custom_call.1']
    #allocation7 [shape = 's32[1]{0}', space=sflag, size = 0x4, scoped, tag = 'scoped memory for tpu_custom_call.1']
    #allocation8 [shape = 'u8[8192]{0}', space=vmem, size = 0x2000, scoped, tag = 'input window, operand 1, single buffered']
    #allocation9 [shape = 's32[1]{0}', space=sflag, size = 0x4, scoped, tag = 'scoped memory for tpu_custom_call.1']
    #allocation10 [shape = 'u8[16384]{0}', space=vmem, size = 0x4000, scoped, tag = 'input window, operand 3, single buffered']
    #allocation11 [shape = 'u8[16384]{0}', space=vmem, size = 0x4000, scoped, tag = 'input window, operand 4, single buffered']
    #allocation12 [shape = 's32[1]{0}', space=sflag, size = 0x4, scoped, tag = 'scoped memory for tpu_custom_call.1']
    #allocation13 [shape = 'u8[1024]{0}', space=vmem, size = 0x400, scoped, tag = 'output window, operand 0, single buffered']
    %11 = vsyncpa [#allocation6], 0
    %12 = vsyncpa [#allocation9], 0
    %13 = vsyncpa [#allocation12], 0
    %14 = vsyncpa [#allocation7], 0
    // Predicated region
    $region2: #{tpu_custom_call.1} parent=1 // pred_check
      _
    $region3: #{tpu_custom_call.1} parent=1 // pred_check_branch
      %16 = sbr.rel (0) target = $region5
    $region4: #{tpu_custom_call.1} parent=1 // pred_region
      %s18 = ssub.s32 256, 256
      %19 = vsyncadd [#allocation6], %s18
      %s20 = sshll.u32 [#allocation5], 4
      %s21 = int_to_ptr.vmem [resolvable:$true] %s20
      %26 = dma.hbm_to_vmem [thread:$0]  %s0, 256, %s21, [#allocation6], 128, 128, 8
    $region5: #{tpu_custom_call.1} parent=1 // pred_fallthru
      _
    // Predicated region
    $region6: #{tpu_custom_call.1} parent=1 // pred_check
      _
    $region7: #{tpu_custom_call.1} parent=1 // pred_check_branch
      %28 = sbr.rel (0) target = $region9
    $region8: #{tpu_custom_call.1} parent=1 // pred_region
      %s30 = ssub.s32 256, 256
      %31 = vsyncadd [#allocation9], %s30
      %s32 = sshll.u32 [#allocation8], 4
      %s33 = int_to_ptr.vmem [resolvable:$true] %s32
      %38 = dma.hbm_to_vmem [thread:$0]  %s1, 256, %s33, [#allocation9], 128, 128, 8
    $region9: #{tpu_custom_call.1} parent=1 // pred_fallthru
      _
    // Predicated region
    $region10: #{tpu_custom_call.1} parent=1 // pred_check
      _
    $region11: #{tpu_custom_call.1} parent=1 // pred_check_branch
      %40 = sbr.rel (0) target = $region13
    $region12: #{tpu_custom_call.1} parent=1 // pred_region
      _
    $region13: #{tpu_custom_call.1} parent=1 // pred_fallthru
      _
    // Predicated region
    $region14: #{tpu_custom_call.1} parent=1 // pred_check
      _
    $region15: #{tpu_custom_call.1} parent=1 // pred_check_branch
      %42 = sbr.rel (0) target = $region17
    $region16: #{tpu_custom_call.1} parent=1 // pred_region
      %s44 = ssub.s32 512, 512
      %45 = vsyncadd [#allocation9], %s44
      %s46 = sshll.u32 [#allocation10], 4
      %s47 = int_to_ptr.vmem [resolvable:$true] %s46
      %52 = dma.hbm_to_vmem [thread:$0]  %s3, 512, %s47, [#allocation9], 128, 128, 8
    $region17: #{tpu_custom_call.1} parent=1 // pred_fallthru
      _
    // Predicated region
    $region18: #{tpu_custom_call.1} parent=1 // pred_check
      _
    $region19: #{tpu_custom_call.1} parent=1 // pred_check_branch
      %54 = sbr.rel (0) target = $region21
    $region20: #{tpu_custom_call.1} parent=1 // pred_region
      %s56 = ssub.s32 512, 512
      %57 = vsyncadd [#allocation12], %s56
      %s58 = sshll.u32 [#allocation11], 4
      %s59 = int_to_ptr.vmem [resolvable:$true] %s58
      %64 = dma.hbm_to_vmem [thread:$0]  %s4, 512, %s59, [#allocation12], 128, 128, 8
    $region21: #{tpu_custom_call.1} parent=1 // pred_fallthru
      _
    // Predicated region
    $region22: #{tpu_custom_call.1} parent=1 // pred_check
      _
    $region23: #{tpu_custom_call.1} parent=1 // pred_check_branch
      %66 = sbr.rel (0) target = $region25
    $region24: #{tpu_custom_call.1} parent=1 // pred_region
      _
    $region25: #{tpu_custom_call.1} parent=1 // pred_fallthru
      _
    // Predicated region
    $region26: #{tpu_custom_call.1} parent=1 // pred_check
      _
    $region27: #{tpu_custom_call.1} parent=1 // pred_check_branch
      %68 = sbr.rel (0) target = $region29
    $region28: #{tpu_custom_call.1} parent=1 // pred_region
      %69 = dma.done [#allocation6], 256
    $region29: #{tpu_custom_call.1} parent=1 // pred_fallthru
      _
    // Predicated region
    $region30: #{tpu_custom_call.1} parent=1 // pred_check
      _
    $region31: #{tpu_custom_call.1} parent=1 // pred_check_branch
      %71 = sbr.rel (0) target = $region33
    $region32: #{tpu_custom_call.1} parent=1 // pred_region
      %72 = dma.done [#allocation9], 256
    $region33: #{tpu_custom_call.1} parent=1 // pred_fallthru
      _
    // Predicated region
    $region34: #{tpu_custom_call.1} parent=1 // pred_check
      _
    $region35: #{tpu_custom_call.1} parent=1 // pred_check_branch
      %74 = sbr.rel (0) target = $region37
    $region36: #{tpu_custom_call.1} parent=1 // pred_region
      %75 = dma.done [#allocation9], 512
    $region37: #{tpu_custom_call.1} parent=1 // pred_fallthru
      _
    // Predicated region
    $region38: #{tpu_custom_call.1} parent=1 // pred_check
      _
    $region39: #{tpu_custom_call.1} parent=1 // pred_check_branch
      %77 = sbr.rel (0) target = $region41
    $region40: #{tpu_custom_call.1} parent=1 // pred_region
      %78 = dma.done [#allocation12], 512
    $region41: #{tpu_custom_call.1} parent=1 // pred_fallthru
      _
    %p79 = scmp.eq.s32.totalorder 0, 0
    // Predicated region
    $region42: #{tpu_custom_call.1} parent=1 // pred_check
      %p80 = pneg %p79
    $region43: #{tpu_custom_call.1} parent=1 // pred_check_branch
      %82 = sbr.rel (%p80) target = $region45
    $region44: #{tpu_custom_call.1} parent=1 // pred_region
      %vm83 = vcmask 254976
      %84 = vst.msk [vmem:[#allocation2] sm:$0x3] %vm83, 0.0
      %85 = vst.msk [vmem:[#allocation3] sm:$0x3] %vm83, 0.0
    $region45: #{tpu_custom_call.1} parent=1 // pred_fallthru
      _
    %v86 = vld [vmem:[#allocation5] sm:$0xff]
    %v87 = vld [vmem:[#allocation5 + $0x8] sm:$0xff]
    %v88 = vld [vmem:[#allocation8] sm:$0xff]
    %v89 = vld [vmem:[#allocation8 + $0x8] sm:$0xff]
    %v90 = vld [vmem:[%s2] sm:$0x1]
    %v92 = vlaneseq
    %v93 = vshrl.u32 %v92, 7
    %v94 = vsub.s32 0, %v93
    %v95 = vrot.slane %v90, %v94
    %vm97 = vcmask 130048
    %v99 = vsel %vm97, %v86, 0
    %v102 = vsel %vm97, %v87, 0
    %104 = vmatprep.subr.mxu0 0.0
    %105 = vmatpush1.msra.mxu0 0.0
    %106 = vmatprep.subr.mxu0 0.0
    %107 = vmatpush1.msra.mxu0 0.0
    %108 = vmatprep.subr.mxu0 0.0
    %109 = vmatpush1.msra.mxu0 0.0
    %110 = vmatprep.subr.mxu0 0.0
    %111 = vmatpush1.msra.mxu0 0.0
    %112 = vmatprep.subr.mxu0 0.0
    %113 = vmatpush1.msra.mxu0 0.0
    %114 = vmatprep.subr.mxu0 0.0
    %115 = vmatpush1.msra.mxu0 0.0
    %116 = vmatprep.subr.mxu0 0.0
    %117 = vmatpush1.msra.mxu0 0.0
    %118 = vmatprep.subr.mxu0 0.0
    %119 = vmatpush1.msra.mxu0 0.0
    %120 = vmatprep.subr.mxu0 0.0
    %121 = vmatpush1.msra.mxu0 0.0
    %122 = vmatprep.subr.mxu0 0.0
    %123 = vmatpush1.msra.mxu0 0.0
    %124 = vmatprep.subr.mxu0 0.0
    %125 = vmatpush1.msra.mxu0 0.0
    %126 = vmatprep.subr.mxu0 0.0
    %127 = vmatpush1.msra.mxu0 0.0
    %128 = vmatprep.subr.mxu0 0.0
    %129 = vmatpush1.msra.mxu0 0.0
    %130 = vmatprep.subr.mxu0 0.0
    %131 = vmatpush1.msra.mxu0 0.0
    %132 = vmatprep.subr.mxu0 0.0
    %133 = vmatpush1.msra.mxu0 %v89
    %134 = vmatprep.subr.mxu0 0.0
    %135 = vmatpush1.msra.mxu0 %v88
    %136 = vmatprep.subr.mxu0 0.0
    %137 = vmatpush2.msra.mxu0 0.0
    %138 = vmatprep.subr.mxu0 0.0
    %139 = vmatpush2.msra.mxu0 0.0
    %140 = vmatprep.subr.mxu0 0.0
    %141 = vmatpush2.msra.mxu0 0.0
    %142 = vmatprep.subr.mxu0 0.0
    %143 = vmatpush2.msra.mxu0 0.0
    %144 = vmatprep.subr.mxu0 0.0
    %145 = vmatpush2.msra.mxu0 0.0
    %146 = vmatprep.subr.mxu0 0.0
    %147 = vmatpush2.msra.mxu0 0.0
    %148 = vmatprep.subr.mxu0 0.0
    %149 = vmatpush2.msra.mxu0 0.0
    %150 = vmatprep.subr.mxu0 0.0
    %151 = vmatpush2.msra.mxu0 0.0
    %152 = vmatprep.subr.mxu0 0.0
    %153 = vmatpush2.msra.mxu0 0.0
    %154 = vmatprep.subr.mxu0 0.0
    %155 = vmatpush2.msra.mxu0 0.0
    %156 = vmatprep.subr.mxu0 0.0
    %157 = vmatpush2.msra.mxu0 0.0
    %158 = vmatprep.subr.mxu0 0.0
    %159 = vmatpush2.msra.mxu0 0.0
    %160 = vmatprep.subr.mxu0 0.0
    %161 = vmatpush2.msra.mxu0 0.0
    %162 = vmatprep.subr.mxu0 0.0
    %163 = vmatpush2.msra.mxu0 0.0
    %164 = vmatprep.subr.mxu0 0.0
    %165 = vmatpush2.msra.mxu0 0.0
    %166 = vmatprep.subr.mxu0 0.0
    %167 = vmatpush2.msra.mxu0 0.0
    %168 = vmatprep.mubr.f32.mxu0 0.0
    %169 = vmatmul.mubr.f32.gmra.mxu0 %v99
    %v170 = vpop.f32.mrf.mxu0
    %v171 = vadd.f32 %v95, %v170
    %v172 = vpop.f32.mrf.mxu0
    %173 = vmatprep.mubr.f32.mxu0 0.0
    %174 = vmatmul.mubr.f32.gmra.mxu0 %v102
    %v175 = vpop.f32.mrf.mxu0
    %v176 = vadd.f32 %v95, %v175
    %v177 = vpop.f32.mrf.mxu0
    %178 = vdwg.mxu0
    %179 = vst [vmem:[#allocation4] sm:$0xff] %v171
    %180 = vst [vmem:[#allocation4 + $0x8] sm:$0xff] %v176
    %v181 = vld [vmem:[#allocation10] sm:$0xff]
    %v182 = vld [vmem:[#allocation10 + $0x8] sm:$0xff]
    %v183 = vld [vmem:[#allocation10 + $0x10] sm:$0xff]
    %v184 = vld [vmem:[#allocation10 + $0x18] sm:$0xff]
    %v185 = vld [vmem:[#allocation2] sm:$0x3]
    %v186 = vld [vmem:[#allocation3] sm:$0x3]
    %v187 = vld [vmem:[#allocation4] sm:$0x1]
    %v188 = vld [vmem:[#allocation4 + $0x8] sm:$0x1]
    %vm189 = vcmask 261120
    %v191 = vsel %vm189, %v185, 0
    %193 = vmatprep.subr.mxu0 0.0
    %194 = vmatpush1.msra.mxu0 0.0
    %195 = vmatprep.subr.mxu0 0.0
    %196 = vmatpush1.msra.mxu0 0.0
    %197 = vmatprep.subr.mxu0 0.0
    %198 = vmatpush1.msra.mxu0 0.0
    %199 = vmatprep.subr.mxu0 0.0
    %200 = vmatpush1.msra.mxu0 0.0
    %201 = vmatprep.subr.mxu0 0.0
    %202 = vmatpush1.msra.mxu0 0.0
    %203 = vmatprep.subr.mxu0 0.0
    %204 = vmatpush1.msra.mxu0 0.0
    %205 = vmatprep.subr.mxu0 0.0
    %206 = vmatpush1.msra.mxu0 0.0
    %207 = vmatprep.subr.mxu0 0.0
    %208 = vmatpush1.msra.mxu0 0.0
    %209 = vmatprep.subr.mxu0 0.0
    %210 = vmatpush1.msra.mxu0 0.0
    %211 = vmatprep.subr.mxu0 0.0
    %212 = vmatpush1.msra.mxu0 0.0
    %213 = vmatprep.subr.mxu0 0.0
    %214 = vmatpush1.msra.mxu0 0.0
    %215 = vmatprep.subr.mxu0 0.0
    %216 = vmatpush1.msra.mxu0 0.0
    %217 = vmatprep.subr.mxu0 0.0
    %218 = vmatpush1.msra.mxu0 %v184
    %219 = vmatprep.subr.mxu0 0.0
    %220 = vmatpush1.msra.mxu0 %v183
    %221 = vmatprep.subr.mxu0 0.0
    %222 = vmatpush1.msra.mxu0 %v182
    %223 = vmatprep.subr.mxu0 0.0
    %224 = vmatpush1.msra.mxu0 %v181
    %225 = vmatprep.subr.mxu0 0.0
    %226 = vmatpush2.msra.mxu0 0.0
    %227 = vmatprep.subr.mxu0 0.0
    %228 = vmatpush2.msra.mxu0 0.0
    %229 = vmatprep.subr.mxu0 0.0
    %230 = vmatpush2.msra.mxu0 0.0
    %231 = vmatprep.subr.mxu0 0.0
    %232 = vmatpush2.msra.mxu0 0.0
    %233 = vmatprep.subr.mxu0 0.0
    %234 = vmatpush2.msra.mxu0 0.0
    %235 = vmatprep.subr.mxu0 0.0
    %236 = vmatpush2.msra.mxu0 0.0
    %237 = vmatprep.subr.mxu0 0.0
    %238 = vmatpush2.msra.mxu0 0.0
    %239 = vmatprep.subr.mxu0 0.0
    %240 = vmatpush2.msra.mxu0 0.0
    %241 = vmatprep.subr.mxu0 0.0
    %242 = vmatpush2.msra.mxu0 0.0
    %243 = vmatprep.subr.mxu0 0.0
    %244 = vmatpush2.msra.mxu0 0.0
    %245 = vmatprep.subr.mxu0 0.0
    %246 = vmatpush2.msra.mxu0 0.0
    %247 = vmatprep.subr.mxu0 0.0
    %248 = vmatpush2.msra.mxu0 0.0
    %249 = vmatprep.subr.mxu0 0.0
    %250 = vmatpush2.msra.mxu0 0.0
    %251 = vmatprep.subr.mxu0 0.0
    %252 = vmatpush2.msra.mxu0 0.0
    %253 = vmatprep.subr.mxu0 0.0
    %254 = vmatpush2.msra.mxu0 0.0
    %255 = vmatprep.subr.mxu0 0.0
    %256 = vmatpush2.msra.mxu0 0.0
    %257 = vmatprep.mubr.f32.mxu0 0.0
    %258 = vmatmul.mubr.f32.gmra.mxu0 %v191
    %v259 = vpop.f32.mrf.mxu0
    %v260 = vadd.f32 0.0, %v259
    %v261 = vpop.f32.mrf.mxu0
    %262 = vdwg.mxu0
    %v264 = vrot.slane %v260, 1
    %v267 = vadd.f32 %v187, %v260
    %v268 = vadd.f32 %v188, %v264
    %v269 = vxor.u32 %v267, 2147483648
    %v270 = vxor.u32 %v268, 2147483648
    %v271 = vmul.f32 %v269, 1.442695
    %v272 = vpow.pop %v271
    %v273 = vmul.f32 %v270, 1.442695
    %v274 = vpow.pop %v273
    %v275 = vadd.f32 %v272, 1.0
    %v276 = vadd.f32 %v274, 1.0
    %v277 = vrcp.pop %v275
    %v278 = vmul.f32 1.0, %v277
    %v279 = vrcp.pop %v276
    %v280 = vmul.f32 1.0, %v279
    %v281 = vtanh.pop %v267
    %v282 = vtanh.pop %v268
    %v284 = vrot.slane %v186, 1
    %285 = vrot.lane.b32.xlu0 %v186, 32
    %v286 = vpop.permute.xlu0 %285
    %287 = vrot.lane.b32.xlu0 %v284, 32
    %v288 = vpop.permute.xlu0 %287
    %v291 = vmul.f32 %v278, %v286
    %v292 = vmul.f32 %v280, %v288
    %295 = vrot.lane.b32.xlu0 %v281, 32
    %v296 = vpop.permute.xlu0 %295
    %297 = vrot.lane.b32.xlu0 %v282, 32
    %v298 = vpop.permute.xlu0 %297
    %v301 = vmul.f32 %v278, %v296
    %v302 = vmul.f32 %v280, %v298
    %305 = vrot.lane.b32.xlu0 %v301, 32
    %v306 = vpop.permute.xlu0 %305
    %307 = vrot.lane.b32.xlu0 %v302, 32
    %v308 = vpop.permute.xlu0 %307
    %v311 = vadd.f32 %v291, %v306
    %v312 = vadd.f32 %v292, %v308
    %v313 = vtanh.pop %v311
    %v314 = vtanh.pop %v312
    %317 = vrot.lane.b32.xlu0 %v313, 32
    %v318 = vpop.permute.xlu0 %317
    %319 = vrot.lane.b32.xlu0 %v314, 32
    %v320 = vpop.permute.xlu0 %319
    %v323 = vmul.f32 %v278, %v318
    %v324 = vmul.f32 %v280, %v320
    %v325 = vld [vmem:[#allocation4 + $0x1] sm:$0x1]
    %v326 = vld [vmem:[#allocation4 + $0x9] sm:$0x1]
    %v329 = vrot.slane %v324, 7
    %vm330 = vcmask 1041409
    %v331 = vsel %vm330, %v329, %v323
    %332 = vrot.lane.b32.xlu0 %v331, 64
    %v333 = vpop.permute.xlu0 %332
    %v334 = vsel %vm189, %v333, 0
    %336 = vmatprep.subr.mxu0 0.0
    %337 = vmatpush1.msra.mxu0 0.0
    %338 = vmatprep.subr.mxu0 0.0
    %339 = vmatpush1.msra.mxu0 0.0
    %340 = vmatprep.subr.mxu0 0.0
    %341 = vmatpush1.msra.mxu0 0.0
    %342 = vmatprep.subr.mxu0 0.0
    %343 = vmatpush1.msra.mxu0 0.0
    %344 = vmatprep.subr.mxu0 0.0
    %345 = vmatpush1.msra.mxu0 0.0
    %346 = vmatprep.subr.mxu0 0.0
    %347 = vmatpush1.msra.mxu0 0.0
    %348 = vmatprep.subr.mxu0 0.0
    %349 = vmatpush1.msra.mxu0 0.0
    %350 = vmatprep.subr.mxu0 0.0
    %351 = vmatpush1.msra.mxu0 0.0
    %352 = vmatprep.subr.mxu0 0.0
    %353 = vmatpush1.msra.mxu0 0.0
    %354 = vmatprep.subr.mxu0 0.0
    %355 = vmatpush1.msra.mxu0 0.0
    %356 = vmatprep.subr.mxu0 0.0
    %357 = vmatpush1.msra.mxu0 0.0
    %358 = vmatprep.subr.mxu0 0.0
    %359 = vmatpush1.msra.mxu0 0.0
    %360 = vmatprep.subr.mxu0 0.0
    %361 = vmatpush1.msra.mxu0 %v184
    %362 = vmatprep.subr.mxu0 0.0
    %363 = vmatpush1.msra.mxu0 %v183
    %364 = vmatprep.subr.mxu0 0.0
    %365 = vmatpush1.msra.mxu0 %v182
    %366 = vmatprep.subr.mxu0 0.0
    %367 = vmatpush1.msra.mxu0 %v181
    %368 = vmatprep.subr.mxu0 0.0
    %369 = vmatpush2.msra.mxu0 0.0
    %370 = vmatprep.subr.mxu0 0.0
    %371 = vmatpush2.msra.mxu0 0.0
    %372 = vmatprep.subr.mxu0 0.0
    %373 = vmatpush2.msra.mxu0 0.0
    %374 = vmatprep.subr.mxu0 0.0
    %375 = vmatpush2.msra.mxu0 0.0
    %376 = vmatprep.subr.mxu0 0.0
    %377 = vmatpush2.msra.mxu0 0.0
    %378 = vmatprep.subr.mxu0 0.0
    %379 = vmatpush2.msra.mxu0 0.0
    %380 = vmatprep.subr.mxu0 0.0
    %381 = vmatpush2.msra.mxu0 0.0
    %382 = vmatprep.subr.mxu0 0.0
    %383 = vmatpush2.msra.mxu0 0.0
    %384 = vmatprep.subr.mxu0 0.0
    %385 = vmatpush2.msra.mxu0 0.0
    %386 = vmatprep.subr.mxu0 0.0
    %387 = vmatpush2.msra.mxu0 0.0
    %388 = vmatprep.subr.mxu0 0.0
    %389 = vmatpush2.msra.mxu0 0.0
    %390 = vmatprep.subr.mxu0 0.0
    %391 = vmatpush2.msra.mxu0 0.0
    %392 = vmatprep.subr.mxu0 0.0
    %393 = vmatpush2.msra.mxu0 0.0
    %394 = vmatprep.subr.mxu0 0.0
    %395 = vmatpush2.msra.mxu0 0.0
    %396 = vmatprep.subr.mxu0 0.0
    %397 = vmatpush2.msra.mxu0 0.0
    %398 = vmatprep.subr.mxu0 0.0
    %399 = vmatpush2.msra.mxu0 0.0
    %400 = vmatprep.mubr.f32.mxu0 0.0
    %401 = vmatmul.mubr.f32.gmra.mxu0 %v334
    %v402 = vpop.f32.mrf.mxu0
    %v403 = vadd.f32 0.0, %v402
    %v404 = vpop.f32.mrf.mxu0
    %405 = vdwg.mxu0
    %v407 = vrot.slane %v403, 1
    %v410 = vadd.f32 %v325, %v403
    %v411 = vadd.f32 %v326, %v407
    %v412 = vxor.u32 %v410, 2147483648
    %v413 = vxor.u32 %v411, 2147483648
    %v414 = vmul.f32 %v412, 1.442695
    %v415 = vpow.pop %v414
    %v416 = vmul.f32 %v413, 1.442695
    %v417 = vpow.pop %v416
    %v418 = vadd.f32 %v415, 1.0
    %v419 = vadd.f32 %v417, 1.0
    %v420 = vrcp.pop %v418
    %v421 = vmul.f32 1.0, %v420
    %v422 = vrcp.pop %v419
    %v423 = vmul.f32 1.0, %v422
    %v424 = vtanh.pop %v410
    %v425 = vtanh.pop %v411
    %v426 = vmul.f32 %v421, %v311
    %v427 = vmul.f32 %v423, %v312
    %430 = vrot.lane.b32.xlu0 %v424, 32
    %v431 = vpop.permute.xlu0 %430
    %432 = vrot.lane.b32.xlu0 %v425, 32
    %v433 = vpop.permute.xlu0 %432
    %v436 = vmul.f32 %v421, %v431
    %v437 = vmul.f32 %v423, %v433
    %440 = vrot.lane.b32.xlu0 %v436, 32
    %v441 = vpop.permute.xlu0 %440
    %442 = vrot.lane.b32.xlu0 %v437, 32
    %v443 = vpop.permute.xlu0 %442
    %v446 = vadd.f32 %v426, %v441
    %v447 = vadd.f32 %v427, %v443
    %v448 = vtanh.pop %v446
    %v449 = vtanh.pop %v447
    %452 = vrot.lane.b32.xlu0 %v448, 32
    %v453 = vpop.permute.xlu0 %452
    %454 = vrot.lane.b32.xlu0 %v449, 32
    %v455 = vpop.permute.xlu0 %454
    %v458 = vmul.f32 %v421, %v453
    %v459 = vmul.f32 %v423, %v455
    %v460 = vld [vmem:[#allocation4 + $0x2] sm:$0x1]
    %v461 = vld [vmem:[#allocation4 + $0xa] sm:$0x1]
    %v464 = vrot.slane %v459, 7
    %v465 = vsel %vm330, %v464, %v458
    %466 = vrot.lane.b32.xlu0 %v465, 64
    %v467 = vpop.permute.xlu0 %466
    %v468 = vsel %vm189, %v467, 0
    %470 = vmatprep.subr.mxu0 0.0
    %471 = vmatpush1.msra.mxu0 0.0
    %472 = vmatprep.subr.mxu0 0.0
    %473 = vmatpush1.msra.mxu0 0.0
    %474 = vmatprep.subr.mxu0 0.0
    %475 = vmatpush1.msra.mxu0 0.0
    %476 = vmatprep.subr.mxu0 0.0
    %477 = vmatpush1.msra.mxu0 0.0
    %478 = vmatprep.subr.mxu0 0.0
    %479 = vmatpush1.msra.mxu0 0.0
    %480 = vmatprep.subr.mxu0 0.0
    %481 = vmatpush1.msra.mxu0 0.0
    %482 = vmatprep.subr.mxu0 0.0
    %483 = vmatpush1.msra.mxu0 0.0
    %484 = vmatprep.subr.mxu0 0.0
    %485 = vmatpush1.msra.mxu0 0.0
    %486 = vmatprep.subr.mxu0 0.0
    %487 = vmatpush1.msra.mxu0 0.0
    %488 = vmatprep.subr.mxu0 0.0
    %489 = vmatpush1.msra.mxu0 0.0
    %490 = vmatprep.subr.mxu0 0.0
    %491 = vmatpush1.msra.mxu0 0.0
    %492 = vmatprep.subr.mxu0 0.0
    %493 = vmatpush1.msra.mxu0 0.0
    %494 = vmatprep.subr.mxu0 0.0
    %495 = vmatpush1.msra.mxu0 %v184
    %496 = vmatprep.subr.mxu0 0.0
    %497 = vmatpush1.msra.mxu0 %v183
    %498 = vmatprep.subr.mxu0 0.0
    %499 = vmatpush1.msra.mxu0 %v182
    %500 = vmatprep.subr.mxu0 0.0
    %501 = vmatpush1.msra.mxu0 %v181
    %502 = vmatprep.subr.mxu0 0.0
    %503 = vmatpush2.msra.mxu0 0.0
    %504 = vmatprep.subr.mxu0 0.0
    %505 = vmatpush2.msra.mxu0 0.0
    %506 = vmatprep.subr.mxu0 0.0
    %507 = vmatpush2.msra.mxu0 0.0
    %508 = vmatprep.subr.mxu0 0.0
    %509 = vmatpush2.msra.mxu0 0.0
    %510 = vmatprep.subr.mxu0 0.0
    %511 = vmatpush2.msra.mxu0 0.0
    %512 = vmatprep.subr.mxu0 0.0
    %513 = vmatpush2.msra.mxu0 0.0
    %514 = vmatprep.subr.mxu0 0.0
    %515 = vmatpush2.msra.mxu0 0.0
    %516 = vmatprep.subr.mxu0 0.0
    %517 = vmatpush2.msra.mxu0 0.0
    %518 = vmatprep.subr.mxu0 0.0
    %519 = vmatpush2.msra.mxu0 0.0
    %520 = vmatprep.subr.mxu0 0.0
    %521 = vmatpush2.msra.mxu0 0.0
    %522 = vmatprep.subr.mxu0 0.0
    %523 = vmatpush2.msra.mxu0 0.0
    %524 = vmatprep.subr.mxu0 0.0
    %525 = vmatpush2.msra.mxu0 0.0
    %526 = vmatprep.subr.mxu0 0.0
    %527 = vmatpush2.msra.mxu0 0.0
    %528 = vmatprep.subr.mxu0 0.0
    %529 = vmatpush2.msra.mxu0 0.0
    %530 = vmatprep.subr.mxu0 0.0
    %531 = vmatpush2.msra.mxu0 0.0
    %532 = vmatprep.subr.mxu0 0.0
    %533 = vmatpush2.msra.mxu0 0.0
    %534 = vmatprep.mubr.f32.mxu0 0.0
    %535 = vmatmul.mubr.f32.gmra.mxu0 %v468
    %v536 = vpop.f32.mrf.mxu0
    %v537 = vadd.f32 0.0, %v536
    %v538 = vpop.f32.mrf.mxu0
    %539 = vdwg.mxu0
    %v541 = vrot.slane %v537, 1
    %v544 = vadd.f32 %v460, %v537
    %v545 = vadd.f32 %v461, %v541
    %v546 = vxor.u32 %v544, 2147483648
    %v547 = vxor.u32 %v545, 2147483648
    %v548 = vmul.f32 %v546, 1.442695
    %v549 = vpow.pop %v548
    %v550 = vmul.f32 %v547, 1.442695
    %v551 = vpow.pop %v550
    %v552 = vadd.f32 %v549, 1.0
    %v553 = vadd.f32 %v551, 1.0
    %v554 = vrcp.pop %v552
    %v555 = vmul.f32 1.0, %v554
    %v556 = vrcp.pop %v553
    %v557 = vmul.f32 1.0, %v556
    %v558 = vtanh.pop %v544
    %v559 = vtanh.pop %v545
    %v560 = vmul.f32 %v555, %v446
    %v561 = vmul.f32 %v557, %v447
    %564 = vrot.lane.b32.xlu0 %v558, 32
    %v565 = vpop.permute.xlu0 %564
    %566 = vrot.lane.b32.xlu0 %v559, 32
    %v567 = vpop.permute.xlu0 %566
    %v570 = vmul.f32 %v555, %v565
    %v571 = vmul.f32 %v557, %v567
    %574 = vrot.lane.b32.xlu0 %v570, 32
    %v575 = vpop.permute.xlu0 %574
    %576 = vrot.lane.b32.xlu0 %v571, 32
    %v577 = vpop.permute.xlu0 %576
    %v580 = vadd.f32 %v560, %v575
    %v581 = vadd.f32 %v561, %v577
    %v582 = vtanh.pop %v580
    %v583 = vtanh.pop %v581
    %586 = vrot.lane.b32.xlu0 %v582, 32
    %v587 = vpop.permute.xlu0 %586
    %588 = vrot.lane.b32.xlu0 %v583, 32
    %v589 = vpop.permute.xlu0 %588
    %v592 = vmul.f32 %v555, %v587
    %v593 = vmul.f32 %v557, %v589
    %v594 = vld [vmem:[#allocation4 + $0x3] sm:$0x1]
    %v595 = vld [vmem:[#allocation4 + $0xb] sm:$0x1]
    %v598 = vrot.slane %v593, 7
    %v599 = vsel %vm330, %v598, %v592
    %600 = vrot.lane.b32.xlu0 %v599, 64
    %v601 = vpop.permute.xlu0 %600
    %v602 = vsel %vm189, %v601, 0
    %604 = vmatprep.subr.mxu0 0.0
    %605 = vmatpush1.msra.mxu0 0.0
    %606 = vmatprep.subr.mxu0 0.0
    %607 = vmatpush1.msra.mxu0 0.0
    %608 = vmatprep.subr.mxu0 0.0
    %609 = vmatpush1.msra.mxu0 0.0
    %610 = vmatprep.subr.mxu0 0.0
    %611 = vmatpush1.msra.mxu0 0.0
    %612 = vmatprep.subr.mxu0 0.0
    %613 = vmatpush1.msra.mxu0 0.0
    %614 = vmatprep.subr.mxu0 0.0
    %615 = vmatpush1.msra.mxu0 0.0
    %616 = vmatprep.subr.mxu0 0.0
    %617 = vmatpush1.msra.mxu0 0.0
    %618 = vmatprep.subr.mxu0 0.0
    %619 = vmatpush1.msra.mxu0 0.0
    %620 = vmatprep.subr.mxu0 0.0
    %621 = vmatpush1.msra.mxu0 0.0
    %622 = vmatprep.subr.mxu0 0.0
    %623 = vmatpush1.msra.mxu0 0.0
    %624 = vmatprep.subr.mxu0 0.0
    %625 = vmatpush1.msra.mxu0 0.0
    %626 = vmatprep.subr.mxu0 0.0
    %627 = vmatpush1.msra.mxu0 0.0
    %628 = vmatprep.subr.mxu0 0.0
    %629 = vmatpush1.msra.mxu0 %v184
    %630 = vmatprep.subr.mxu0 0.0
    %631 = vmatpush1.msra.mxu0 %v183
    %632 = vmatprep.subr.mxu0 0.0
    %633 = vmatpush1.msra.mxu0 %v182
    %634 = vmatprep.subr.mxu0 0.0
    %635 = vmatpush1.msra.mxu0 %v181
    %636 = vmatprep.subr.mxu0 0.0
    %637 = vmatpush2.msra.mxu0 0.0
    %638 = vmatprep.subr.mxu0 0.0
    %639 = vmatpush2.msra.mxu0 0.0
    %640 = vmatprep.subr.mxu0 0.0
    %641 = vmatpush2.msra.mxu0 0.0
    %642 = vmatprep.subr.mxu0 0.0
    %643 = vmatpush2.msra.mxu0 0.0
    %644 = vmatprep.subr.mxu0 0.0
    %645 = vmatpush2.msra.mxu0 0.0
    %646 = vmatprep.subr.mxu0 0.0
    %647 = vmatpush2.msra.mxu0 0.0
    %648 = vmatprep.subr.mxu0 0.0
    %649 = vmatpush2.msra.mxu0 0.0
    %650 = vmatprep.subr.mxu0 0.0
    %651 = vmatpush2.msra.mxu0 0.0
    %652 = vmatprep.subr.mxu0 0.0
    %653 = vmatpush2.msra.mxu0 0.0
    %654 = vmatprep.subr.mxu0 0.0
    %655 = vmatpush2.msra.mxu0 0.0
    %656 = vmatprep.subr.mxu0 0.0
    %657 = vmatpush2.msra.mxu0 0.0
    %658 = vmatprep.subr.mxu0 0.0
    %659 = vmatpush2.msra.mxu0 0.0
    %660 = vmatprep.subr.mxu0 0.0
    %661 = vmatpush2.msra.mxu0 0.0
    %662 = vmatprep.subr.mxu0 0.0
    %663 = vmatpush2.msra.mxu0 0.0
    %664 = vmatprep.subr.mxu0 0.0
    %665 = vmatpush2.msra.mxu0 0.0
    %666 = vmatprep.subr.mxu0 0.0
    %667 = vmatpush2.msra.mxu0 0.0
    %668 = vmatprep.mubr.f32.mxu0 0.0
    %669 = vmatmul.mubr.f32.gmra.mxu0 %v602
    %v670 = vpop.f32.mrf.mxu0
    %v671 = vadd.f32 0.0, %v670
    %v672 = vpop.f32.mrf.mxu0
    %673 = vdwg.mxu0
    %v675 = vrot.slane %v671, 1
    %v678 = vadd.f32 %v594, %v671
    %v679 = vadd.f32 %v595, %v675
    %v680 = vxor.u32 %v678, 2147483648
    %v681 = vxor.u32 %v679, 2147483648
    %v682 = vmul.f32 %v680, 1.442695
    %v683 = vpow.pop %v682
    %v684 = vmul.f32 %v681, 1.442695
    %v685 = vpow.pop %v684
    %v686 = vadd.f32 %v683, 1.0
    %v687 = vadd.f32 %v685, 1.0
    %v688 = vrcp.pop %v686
    %v689 = vmul.f32 1.0, %v688
    %v690 = vrcp.pop %v687
    %v691 = vmul.f32 1.0, %v690
    %v692 = vtanh.pop %v678
    %v693 = vtanh.pop %v679
    %v694 = vmul.f32 %v689, %v580
    %v695 = vmul.f32 %v691, %v581
    %698 = vrot.lane.b32.xlu0 %v692, 32
    %v699 = vpop.permute.xlu0 %698
    %700 = vrot.lane.b32.xlu0 %v693, 32
    %v701 = vpop.permute.xlu0 %700
    %v704 = vmul.f32 %v689, %v699
    %v705 = vmul.f32 %v691, %v701
    %708 = vrot.lane.b32.xlu0 %v704, 32
    %v709 = vpop.permute.xlu0 %708
    %710 = vrot.lane.b32.xlu0 %v705, 32
    %v711 = vpop.permute.xlu0 %710
    %v714 = vadd.f32 %v694, %v709
    %v715 = vadd.f32 %v695, %v711
    %v716 = vtanh.pop %v714
    %v717 = vtanh.pop %v715
    %720 = vrot.lane.b32.xlu0 %v716, 32
    %v721 = vpop.permute.xlu0 %720
    %722 = vrot.lane.b32.xlu0 %v717, 32
    %v723 = vpop.permute.xlu0 %722
    %v726 = vmul.f32 %v689, %v721
    %v727 = vmul.f32 %v691, %v723
    %v728 = vld [vmem:[#allocation4 + $0x4] sm:$0x1]
    %v729 = vld [vmem:[#allocation4 + $0xc] sm:$0x1]
    %v732 = vrot.slane %v727, 7
    %v733 = vsel %vm330, %v732, %v726
    %734 = vrot.lane.b32.xlu0 %v733, 64
    %v735 = vpop.permute.xlu0 %734
    %v736 = vsel %vm189, %v735, 0
    %738 = vmatprep.subr.mxu0 0.0
    %739 = vmatpush1.msra.mxu0 0.0
    %740 = vmatprep.subr.mxu0 0.0
    %741 = vmatpush1.msra.mxu0 0.0
    %742 = vmatprep.subr.mxu0 0.0
    %743 = vmatpush1.msra.mxu0 0.0
    %744 = vmatprep.subr.mxu0 0.0
    %745 = vmatpush1.msra.mxu0 0.0
    %746 = vmatprep.subr.mxu0 0.0
    %747 = vmatpush1.msra.mxu0 0.0
    %748 = vmatprep.subr.mxu0 0.0
    %749 = vmatpush1.msra.mxu0 0.0
    %750 = vmatprep.subr.mxu0 0.0
    %751 = vmatpush1.msra.mxu0 0.0
    %752 = vmatprep.subr.mxu0 0.0
    %753 = vmatpush1.msra.mxu0 0.0
    %754 = vmatprep.subr.mxu0 0.0
    %755 = vmatpush1.msra.mxu0 0.0
    %756 = vmatprep.subr.mxu0 0.0
    %757 = vmatpush1.msra.mxu0 0.0
    %758 = vmatprep.subr.mxu0 0.0
    %759 = vmatpush1.msra.mxu0 0.0
    %760 = vmatprep.subr.mxu0 0.0
    %761 = vmatpush1.msra.mxu0 0.0
    %762 = vmatprep.subr.mxu0 0.0
    %763 = vmatpush1.msra.mxu0 %v184
    %764 = vmatprep.subr.mxu0 0.0
    %765 = vmatpush1.msra.mxu0 %v183
    %766 = vmatprep.subr.mxu0 0.0
    %767 = vmatpush1.msra.mxu0 %v182
    %768 = vmatprep.subr.mxu0 0.0
    %769 = vmatpush1.msra.mxu0 %v181
    %770 = vmatprep.subr.mxu0 0.0
    %771 = vmatpush2.msra.mxu0 0.0
    %772 = vmatprep.subr.mxu0 0.0
    %773 = vmatpush2.msra.mxu0 0.0
    %774 = vmatprep.subr.mxu0 0.0
    %775 = vmatpush2.msra.mxu0 0.0
    %776 = vmatprep.subr.mxu0 0.0
    %777 = vmatpush2.msra.mxu0 0.0
    %778 = vmatprep.subr.mxu0 0.0
    %779 = vmatpush2.msra.mxu0 0.0
    %780 = vmatprep.subr.mxu0 0.0
    %781 = vmatpush2.msra.mxu0 0.0
    %782 = vmatprep.subr.mxu0 0.0
    %783 = vmatpush2.msra.mxu0 0.0
    %784 = vmatprep.subr.mxu0 0.0
    %785 = vmatpush2.msra.mxu0 0.0
    %786 = vmatprep.subr.mxu0 0.0
    %787 = vmatpush2.msra.mxu0 0.0
    %788 = vmatprep.subr.mxu0 0.0
    %789 = vmatpush2.msra.mxu0 0.0
    %790 = vmatprep.subr.mxu0 0.0
    %791 = vmatpush2.msra.mxu0 0.0
    %792 = vmatprep.subr.mxu0 0.0
    %793 = vmatpush2.msra.mxu0 0.0
    %794 = vmatprep.subr.mxu0 0.0
    %795 = vmatpush2.msra.mxu0 0.0
    %796 = vmatprep.subr.mxu0 0.0
    %797 = vmatpush2.msra.mxu0 0.0
    %798 = vmatprep.subr.mxu0 0.0
    %799 = vmatpush2.msra.mxu0 0.0
    %800 = vmatprep.subr.mxu0 0.0
    %801 = vmatpush2.msra.mxu0 0.0
    %802 = vmatprep.mubr.f32.mxu0 0.0
    %803 = vmatmul.mubr.f32.gmra.mxu0 %v736
    %v804 = vpop.f32.mrf.mxu0
    %v805 = vadd.f32 0.0, %v804
    %v806 = vpop.f32.mrf.mxu0
    %807 = vdwg.mxu0
    %v809 = vrot.slane %v805, 1
    %v812 = vadd.f32 %v728, %v805
    %v813 = vadd.f32 %v729, %v809
    %v814 = vxor.u32 %v812, 2147483648
    %v815 = vxor.u32 %v813, 2147483648
    %v816 = vmul.f32 %v814, 1.442695
    %v817 = vpow.pop %v816
    %v818 = vmul.f32 %v815, 1.442695
    %v819 = vpow.pop %v818
    %v820 = vadd.f32 %v817, 1.0
    %v821 = vadd.f32 %v819, 1.0
    %v822 = vrcp.pop %v820
    %v823 = vmul.f32 1.0, %v822
    %v824 = vrcp.pop %v821
    %v825 = vmul.f32 1.0, %v824
    %v826 = vtanh.pop %v812
    %v827 = vtanh.pop %v813
    %v828 = vmul.f32 %v823, %v714
    %v829 = vmul.f32 %v825, %v715
    %832 = vrot.lane.b32.xlu0 %v826, 32
    %v833 = vpop.permute.xlu0 %832
    %834 = vrot.lane.b32.xlu0 %v827, 32
    %v835 = vpop.permute.xlu0 %834
    %v838 = vmul.f32 %v823, %v833
    %v839 = vmul.f32 %v825, %v835
    %842 = vrot.lane.b32.xlu0 %v838, 32
    %v843 = vpop.permute.xlu0 %842
    %844 = vrot.lane.b32.xlu0 %v839, 32
    %v845 = vpop.permute.xlu0 %844
    %v848 = vadd.f32 %v828, %v843
    %v849 = vadd.f32 %v829, %v845
    %v850 = vtanh.pop %v848
    %v851 = vtanh.pop %v849
    %854 = vrot.lane.b32.xlu0 %v850, 32
    %v855 = vpop.permute.xlu0 %854
    %856 = vrot.lane.b32.xlu0 %v851, 32
    %v857 = vpop.permute.xlu0 %856
    %v860 = vmul.f32 %v823, %v855
    %v861 = vmul.f32 %v825, %v857
    %v862 = vld [vmem:[#allocation4 + $0x5] sm:$0x1]
    %v863 = vld [vmem:[#allocation4 + $0xd] sm:$0x1]
    %v866 = vrot.slane %v861, 7
    %v867 = vsel %vm330, %v866, %v860
    %868 = vrot.lane.b32.xlu0 %v867, 64
    %v869 = vpop.permute.xlu0 %868
    %v870 = vsel %vm189, %v869, 0
    %872 = vmatprep.subr.mxu0 0.0
    %873 = vmatpush1.msra.mxu0 0.0
    %874 = vmatprep.subr.mxu0 0.0
    %875 = vmatpush1.msra.mxu0 0.0
    %876 = vmatprep.subr.mxu0 0.0
    %877 = vmatpush1.msra.mxu0 0.0
    %878 = vmatprep.subr.mxu0 0.0
    %879 = vmatpush1.msra.mxu0 0.0
    %880 = vmatprep.subr.mxu0 0.0
    %881 = vmatpush1.msra.mxu0 0.0
    %882 = vmatprep.subr.mxu0 0.0
    %883 = vmatpush1.msra.mxu0 0.0
    %884 = vmatprep.subr.mxu0 0.0
    %885 = vmatpush1.msra.mxu0 0.0
    %886 = vmatprep.subr.mxu0 0.0
    %887 = vmatpush1.msra.mxu0 0.0
    %888 = vmatprep.subr.mxu0 0.0
    %889 = vmatpush1.msra.mxu0 0.0
    %890 = vmatprep.subr.mxu0 0.0
    %891 = vmatpush1.msra.mxu0 0.0
    %892 = vmatprep.subr.mxu0 0.0
    %893 = vmatpush1.msra.mxu0 0.0
    %894 = vmatprep.subr.mxu0 0.0
    %895 = vmatpush1.msra.mxu0 0.0
    %896 = vmatprep.subr.mxu0 0.0
    %897 = vmatpush1.msra.mxu0 %v184
    %898 = vmatprep.subr.mxu0 0.0
    %899 = vmatpush1.msra.mxu0 %v183
    %900 = vmatprep.subr.mxu0 0.0
    %901 = vmatpush1.msra.mxu0 %v182
    %902 = vmatprep.subr.mxu0 0.0
    %903 = vmatpush1.msra.mxu0 %v181
    %904 = vmatprep.subr.mxu0 0.0
    %905 = vmatpush2.msra.mxu0 0.0
    %906 = vmatprep.subr.mxu0 0.0
    %907 = vmatpush2.msra.mxu0 0.0
    %908 = vmatprep.subr.mxu0 0.0
    %909 = vmatpush2.msra.mxu0 0.0
    %910 = vmatprep.subr.mxu0 0.0
    %911 = vmatpush2.msra.mxu0 0.0
    %912 = vmatprep.subr.mxu0 0.0
    %913 = vmatpush2.msra.mxu0 0.0
    %914 = vmatprep.subr.mxu0 0.0
    %915 = vmatpush2.msra.mxu0 0.0
    %916 = vmatprep.subr.mxu0 0.0
    %917 = vmatpush2.msra.mxu0 0.0
    %918 = vmatprep.subr.mxu0 0.0
    %919 = vmatpush2.msra.mxu0 0.0
    %920 = vmatprep.subr.mxu0 0.0
    %921 = vmatpush2.msra.mxu0 0.0
    %922 = vmatprep.subr.mxu0 0.0
    %923 = vmatpush2.msra.mxu0 0.0
    %924 = vmatprep.subr.mxu0 0.0
    %925 = vmatpush2.msra.mxu0 0.0
    %926 = vmatprep.subr.mxu0 0.0
    %927 = vmatpush2.msra.mxu0 0.0
    %928 = vmatprep.subr.mxu0 0.0
    %929 = vmatpush2.msra.mxu0 0.0
    %930 = vmatprep.subr.mxu0 0.0
    %931 = vmatpush2.msra.mxu0 0.0
    %932 = vmatprep.subr.mxu0 0.0
    %933 = vmatpush2.msra.mxu0 0.0
    %934 = vmatprep.subr.mxu0 0.0
    %935 = vmatpush2.msra.mxu0 0.0
    %936 = vmatprep.mubr.f32.mxu0 0.0
    %937 = vmatmul.mubr.f32.gmra.mxu0 %v870
    %v938 = vpop.f32.mrf.mxu0
    %v939 = vadd.f32 0.0, %v938
    %v940 = vpop.f32.mrf.mxu0
    %941 = vdwg.mxu0
    %v943 = vrot.slane %v939, 1
    %v946 = vadd.f32 %v862, %v939
    %v947 = vadd.f32 %v863, %v943
    %v948 = vxor.u32 %v946, 2147483648
    %v949 = vxor.u32 %v947, 2147483648
    %v950 = vmul.f32 %v948, 1.442695
    %v951 = vpow.pop %v950
    %v952 = vmul.f32 %v949, 1.442695
    %v953 = vpow.pop %v952
    %v954 = vadd.f32 %v951, 1.0
    %v955 = vadd.f32 %v953, 1.0
    %v956 = vrcp.pop %v954
    %v957 = vmul.f32 1.0, %v956
    %v958 = vrcp.pop %v955
    %v959 = vmul.f32 1.0, %v958
    %v960 = vtanh.pop %v946
    %v961 = vtanh.pop %v947
    %v962 = vmul.f32 %v957, %v848
    %v963 = vmul.f32 %v959, %v849
    %966 = vrot.lane.b32.xlu0 %v960, 32
    %v967 = vpop.permute.xlu0 %966
    %968 = vrot.lane.b32.xlu0 %v961, 32
    %v969 = vpop.permute.xlu0 %968
    %v972 = vmul.f32 %v957, %v967
    %v973 = vmul.f32 %v959, %v969
    %976 = vrot.lane.b32.xlu0 %v972, 32
    %v977 = vpop.permute.xlu0 %976
    %978 = vrot.lane.b32.xlu0 %v973, 32
    %v979 = vpop.permute.xlu0 %978
    %v982 = vadd.f32 %v962, %v977
    %v983 = vadd.f32 %v963, %v979
    %v984 = vtanh.pop %v982
    %v985 = vtanh.pop %v983
    %988 = vrot.lane.b32.xlu0 %v984, 32
    %v989 = vpop.permute.xlu0 %988
    %990 = vrot.lane.b32.xlu0 %v985, 32
    %v991 = vpop.permute.xlu0 %990
    %v994 = vmul.f32 %v957, %v989
    %v995 = vmul.f32 %v959, %v991
    %v996 = vld [vmem:[#allocation4 + $0x6] sm:$0x1]
    %v997 = vld [vmem:[#allocation4 + $0xe] sm:$0x1]
    %v1000 = vrot.slane %v995, 7
    %v1001 = vsel %vm330, %v1000, %v994
    %1002 = vrot.lane.b32.xlu0 %v1001, 64
    %v1003 = vpop.permute.xlu0 %1002
    %v1004 = vsel %vm189, %v1003, 0
    %1006 = vmatprep.subr.mxu0 0.0
    %1007 = vmatpush1.msra.mxu0 0.0
    %1008 = vmatprep.subr.mxu0 0.0
    %1009 = vmatpush1.msra.mxu0 0.0
    %1010 = vmatprep.subr.mxu0 0.0
    %1011 = vmatpush1.msra.mxu0 0.0
    %1012 = vmatprep.subr.mxu0 0.0
    %1013 = vmatpush1.msra.mxu0 0.0
    %1014 = vmatprep.subr.mxu0 0.0
    %1015 = vmatpush1.msra.mxu0 0.0
    %1016 = vmatprep.subr.mxu0 0.0
    %1017 = vmatpush1.msra.mxu0 0.0
    %1018 = vmatprep.subr.mxu0 0.0
    %1019 = vmatpush1.msra.mxu0 0.0
    %1020 = vmatprep.subr.mxu0 0.0
    %1021 = vmatpush1.msra.mxu0 0.0
    %1022 = vmatprep.subr.mxu0 0.0
    %1023 = vmatpush1.msra.mxu0 0.0
    %1024 = vmatprep.subr.mxu0 0.0
    %1025 = vmatpush1.msra.mxu0 0.0
    %1026 = vmatprep.subr.mxu0 0.0
    %1027 = vmatpush1.msra.mxu0 0.0
    %1028 = vmatprep.subr.mxu0 0.0
    %1029 = vmatpush1.msra.mxu0 0.0
    %1030 = vmatprep.subr.mxu0 0.0
    %1031 = vmatpush1.msra.mxu0 %v184
    %1032 = vmatprep.subr.mxu0 0.0
    %1033 = vmatpush1.msra.mxu0 %v183
    %1034 = vmatprep.subr.mxu0 0.0
    %1035 = vmatpush1.msra.mxu0 %v182
    %1036 = vmatprep.subr.mxu0 0.0
    %1037 = vmatpush1.msra.mxu0 %v181
    %1038 = vmatprep.subr.mxu0 0.0
    %1039 = vmatpush2.msra.mxu0 0.0
    %1040 = vmatprep.subr.mxu0 0.0
    %1041 = vmatpush2.msra.mxu0 0.0
    %1042 = vmatprep.subr.mxu0 0.0
    %1043 = vmatpush2.msra.mxu0 0.0
    %1044 = vmatprep.subr.mxu0 0.0
    %1045 = vmatpush2.msra.mxu0 0.0
    %1046 = vmatprep.subr.mxu0 0.0
    %1047 = vmatpush2.msra.mxu0 0.0
    %1048 = vmatprep.subr.mxu0 0.0
    %1049 = vmatpush2.msra.mxu0 0.0
    %1050 = vmatprep.subr.mxu0 0.0
    %1051 = vmatpush2.msra.mxu0 0.0
    %1052 = vmatprep.subr.mxu0 0.0
    %1053 = vmatpush2.msra.mxu0 0.0
    %1054 = vmatprep.subr.mxu0 0.0
    %1055 = vmatpush2.msra.mxu0 0.0
    %1056 = vmatprep.subr.mxu0 0.0
    %1057 = vmatpush2.msra.mxu0 0.0
    %1058 = vmatprep.subr.mxu0 0.0
    %1059 = vmatpush2.msra.mxu0 0.0
    %1060 = vmatprep.subr.mxu0 0.0
    %1061 = vmatpush2.msra.mxu0 0.0
    %1062 = vmatprep.subr.mxu0 0.0
    %1063 = vmatpush2.msra.mxu0 0.0
    %1064 = vmatprep.subr.mxu0 0.0
    %1065 = vmatpush2.msra.mxu0 0.0
    %1066 = vmatprep.subr.mxu0 0.0
    %1067 = vmatpush2.msra.mxu0 0.0
    %1068 = vmatprep.subr.mxu0 0.0
    %1069 = vmatpush2.msra.mxu0 0.0
    %1070 = vmatprep.mubr.f32.mxu0 0.0
    %1071 = vmatmul.mubr.f32.gmra.mxu0 %v1004
    %v1072 = vpop.f32.mrf.mxu0
    %v1073 = vadd.f32 0.0, %v1072
    %v1074 = vpop.f32.mrf.mxu0
    %1075 = vdwg.mxu0
    %v1077 = vrot.slane %v1073, 1
    %v1080 = vadd.f32 %v996, %v1073
    %v1081 = vadd.f32 %v997, %v1077
    %v1082 = vxor.u32 %v1080, 2147483648
    %v1083 = vxor.u32 %v1081, 2147483648
    %v1084 = vmul.f32 %v1082, 1.442695
    %v1085 = vpow.pop %v1084
    %v1086 = vmul.f32 %v1083, 1.442695
    %v1087 = vpow.pop %v1086
    %v1088 = vadd.f32 %v1085, 1.0
    %v1089 = vadd.f32 %v1087, 1.0
    %v1090 = vrcp.pop %v1088
    %v1091 = vmul.f32 1.0, %v1090
    %v1092 = vrcp.pop %v1089
    %v1093 = vmul.f32 1.0, %v1092
    %v1094 = vtanh.pop %v1080
    %v1095 = vtanh.pop %v1081
    %v1096 = vmul.f32 %v1091, %v982
    %v1097 = vmul.f32 %v1093, %v983
    %1100 = vrot.lane.b32.xlu0 %v1094, 32
    %v1101 = vpop.permute.xlu0 %1100
    %1102 = vrot.lane.b32.xlu0 %v1095, 32
    %v1103 = vpop.permute.xlu0 %1102
    %v1106 = vmul.f32 %v1091, %v1101
    %v1107 = vmul.f32 %v1093, %v1103
    %1110 = vrot.lane.b32.xlu0 %v1106, 32
    %v1111 = vpop.permute.xlu0 %1110
    %1112 = vrot.lane.b32.xlu0 %v1107, 32
    %v1113 = vpop.permute.xlu0 %1112
    %v1116 = vadd.f32 %v1096, %v1111
    %v1117 = vadd.f32 %v1097, %v1113
    %v1118 = vtanh.pop %v1116
    %v1119 = vtanh.pop %v1117
    %1122 = vrot.lane.b32.xlu0 %v1118, 32
    %v1123 = vpop.permute.xlu0 %1122
    %1124 = vrot.lane.b32.xlu0 %v1119, 32
    %v1125 = vpop.permute.xlu0 %1124
    %v1128 = vmul.f32 %v1091, %v1123
    %v1129 = vmul.f32 %v1093, %v1125
    %v1130 = vld [vmem:[#allocation4 + $0x7] sm:$0x1]
    %v1131 = vld [vmem:[#allocation4 + $0xf] sm:$0x1]
    %v1134 = vrot.slane %v1129, 7
    %v1135 = vsel %vm330, %v1134, %v1128
    %1136 = vrot.lane.b32.xlu0 %v1135, 64
    %v1137 = vpop.permute.xlu0 %1136
    %v1138 = vsel %vm189, %v1137, 0
    %1140 = vmatprep.subr.mxu0 0.0
    %1141 = vmatpush1.msra.mxu0 0.0
    %1142 = vmatprep.subr.mxu0 0.0
    %1143 = vmatpush1.msra.mxu0 0.0
    %1144 = vmatprep.subr.mxu0 0.0
    %1145 = vmatpush1.msra.mxu0 0.0
    %1146 = vmatprep.subr.mxu0 0.0
    %1147 = vmatpush1.msra.mxu0 0.0
    %1148 = vmatprep.subr.mxu0 0.0
    %1149 = vmatpush1.msra.mxu0 0.0
    %1150 = vmatprep.subr.mxu0 0.0
    %1151 = vmatpush1.msra.mxu0 0.0
    %1152 = vmatprep.subr.mxu0 0.0
    %1153 = vmatpush1.msra.mxu0 0.0
    %1154 = vmatprep.subr.mxu0 0.0
    %1155 = vmatpush1.msra.mxu0 0.0
    %1156 = vmatprep.subr.mxu0 0.0
    %1157 = vmatpush1.msra.mxu0 0.0
    %1158 = vmatprep.subr.mxu0 0.0
    %1159 = vmatpush1.msra.mxu0 0.0
    %1160 = vmatprep.subr.mxu0 0.0
    %1161 = vmatpush1.msra.mxu0 0.0
    %1162 = vmatprep.subr.mxu0 0.0
    %1163 = vmatpush1.msra.mxu0 0.0
    %1164 = vmatprep.subr.mxu0 0.0
    %1165 = vmatpush1.msra.mxu0 %v184
    %1166 = vmatprep.subr.mxu0 0.0
    %1167 = vmatpush1.msra.mxu0 %v183
    %1168 = vmatprep.subr.mxu0 0.0
    %1169 = vmatpush1.msra.mxu0 %v182
    %1170 = vmatprep.subr.mxu0 0.0
    %1171 = vmatpush1.msra.mxu0 %v181
    %1172 = vmatprep.subr.mxu0 0.0
    %1173 = vmatpush2.msra.mxu0 0.0
    %1174 = vmatprep.subr.mxu0 0.0
    %1175 = vmatpush2.msra.mxu0 0.0
    %1176 = vmatprep.subr.mxu0 0.0
    %1177 = vmatpush2.msra.mxu0 0.0
    %1178 = vmatprep.subr.mxu0 0.0
    %1179 = vmatpush2.msra.mxu0 0.0
    %1180 = vmatprep.subr.mxu0 0.0
    %1181 = vmatpush2.msra.mxu0 0.0
    %1182 = vmatprep.subr.mxu0 0.0
    %1183 = vmatpush2.msra.mxu0 0.0
    %1184 = vmatprep.subr.mxu0 0.0
    %1185 = vmatpush2.msra.mxu0 0.0
    %1186 = vmatprep.subr.mxu0 0.0
    %1187 = vmatpush2.msra.mxu0 0.0
    %1188 = vmatprep.subr.mxu0 0.0
    %1189 = vmatpush2.msra.mxu0 0.0
    %1190 = vmatprep.subr.mxu0 0.0
    %1191 = vmatpush2.msra.mxu0 0.0
    %1192 = vmatprep.subr.mxu0 0.0
    %1193 = vmatpush2.msra.mxu0 0.0
    %1194 = vmatprep.subr.mxu0 0.0
    %1195 = vmatpush2.msra.mxu0 0.0
    %1196 = vmatprep.subr.mxu0 0.0
    %1197 = vmatpush2.msra.mxu0 0.0
    %1198 = vmatprep.subr.mxu0 0.0
    %1199 = vmatpush2.msra.mxu0 0.0
    %1200 = vmatprep.subr.mxu0 0.0
    %1201 = vmatpush2.msra.mxu0 0.0
    %1202 = vmatprep.subr.mxu0 0.0
    %1203 = vmatpush2.msra.mxu0 0.0
    %1204 = vmatprep.mubr.f32.mxu0 0.0
    %1205 = vmatmul.mubr.f32.gmra.mxu0 %v1138
    %v1206 = vpop.f32.mrf.mxu0
    %v1207 = vadd.f32 0.0, %v1206
    %v1208 = vpop.f32.mrf.mxu0
    %1209 = vdwg.mxu0
    %v1211 = vrot.slane %v1207, 1
    %v1214 = vadd.f32 %v1130, %v1207
    %v1215 = vadd.f32 %v1131, %v1211
    %v1216 = vxor.u32 %v1214, 2147483648
    %v1217 = vxor.u32 %v1215, 2147483648
    %v1218 = vmul.f32 %v1216, 1.442695
    %v1219 = vpow.pop %v1218
    %v1220 = vmul.f32 %v1217, 1.442695
    %v1221 = vpow.pop %v1220
    %v1222 = vadd.f32 %v1219, 1.0
    %v1223 = vadd.f32 %v1221, 1.0
    %v1224 = vrcp.pop %v1222
    %v1225 = vmul.f32 1.0, %v1224
    %v1226 = vrcp.pop %v1223
    %v1227 = vmul.f32 1.0, %v1226
    %v1228 = vtanh.pop %v1214
    %v1229 = vtanh.pop %v1215
    %v1230 = vmul.f32 %v1225, %v1116
    %v1231 = vmul.f32 %v1227, %v1117
    %1234 = vrot.lane.b32.xlu0 %v1228, 32
    %v1235 = vpop.permute.xlu0 %1234
    %1236 = vrot.lane.b32.xlu0 %v1229, 32
    %v1237 = vpop.permute.xlu0 %1236
    %v1240 = vmul.f32 %v1225, %v1235
    %v1241 = vmul.f32 %v1227, %v1237
    %1244 = vrot.lane.b32.xlu0 %v1240, 32
    %v1245 = vpop.permute.xlu0 %1244
    %1246 = vrot.lane.b32.xlu0 %v1241, 32
    %v1247 = vpop.permute.xlu0 %1246
    %v1250 = vadd.f32 %v1230, %v1245
    %v1251 = vadd.f32 %v1231, %v1247
    %v1252 = vtanh.pop %v1250
    %v1253 = vtanh.pop %v1251
    %1256 = vrot.lane.b32.xlu0 %v1252, 32
    %v1257 = vpop.permute.xlu0 %1256
    %1258 = vrot.lane.b32.xlu0 %v1253, 32
    %v1259 = vpop.permute.xlu0 %1258
    %v1262 = vmul.f32 %v1225, %v1257
    %v1263 = vmul.f32 %v1227, %v1259
    %v1266 = vrot.slane %v1263, 7
    %v1267 = vsel %vm330, %v1266, %v1262
    %1268 = vrot.lane.b32.xlu0 %v1267, 64
    %v1269 = vpop.permute.xlu0 %1268
    %vm1271 = vcmask 254976
    %1272 = vst.msk [vmem:[#allocation2] sm:$0x3] %vm1271, %v1269
    %v1275 = vrot.slane %v1251, 7
    %v1276 = vsel %vm330, %v1275, %v1250
    %1277 = vrot.lane.b32.xlu0 %v1276, 96
    %v1278 = vpop.permute.xlu0 %1277
    %1280 = vst.msk [vmem:[#allocation3] sm:$0x3] %vm1271, %v1278
    // Predicated region
    $region46: #{tpu_custom_call.1} parent=1 // pred_check
      %p1281 = pneg %p79
    $region47: #{tpu_custom_call.1} parent=1 // pred_check_branch
      %1283 = sbr.rel (%p1281) target = $region49
    $region48: #{tpu_custom_call.1} parent=1 // pred_region
      %v1284 = vld [vmem:[#allocation11] sm:$0xff]
      %v1285 = vld [vmem:[#allocation11 + $0x8] sm:$0xff]
      %v1286 = vld [vmem:[#allocation11 + $0x10] sm:$0xff]
      %v1287 = vld [vmem:[#allocation11 + $0x18] sm:$0xff]
      %v1288 = vld [vmem:[%s5] sm:$0x1]
      %v1290 = vlaneseq
      %v1291 = vshrl.u32 %v1290, 7
      %v1292 = vsub.s32 0, %v1291
      %v1293 = vrot.slane %v1288, %v1292
      %v1295 = vsel %vm189, %v1269, 0
      %1297 = vmatprep.subr.mxu0 0.0
      %1298 = vmatpush1.msra.mxu0 0.0
      %1299 = vmatprep.subr.mxu0 0.0
      %1300 = vmatpush1.msra.mxu0 0.0
      %1301 = vmatprep.subr.mxu0 0.0
      %1302 = vmatpush1.msra.mxu0 0.0
      %1303 = vmatprep.subr.mxu0 0.0
      %1304 = vmatpush1.msra.mxu0 0.0
      %1305 = vmatprep.subr.mxu0 0.0
      %1306 = vmatpush1.msra.mxu0 0.0
      %1307 = vmatprep.subr.mxu0 0.0
      %1308 = vmatpush1.msra.mxu0 0.0
      %1309 = vmatprep.subr.mxu0 0.0
      %1310 = vmatpush1.msra.mxu0 0.0
      %1311 = vmatprep.subr.mxu0 0.0
      %1312 = vmatpush1.msra.mxu0 0.0
      %1313 = vmatprep.subr.mxu0 0.0
      %1314 = vmatpush1.msra.mxu0 0.0
      %1315 = vmatprep.subr.mxu0 0.0
      %1316 = vmatpush1.msra.mxu0 0.0
      %1317 = vmatprep.subr.mxu0 0.0
      %1318 = vmatpush1.msra.mxu0 0.0
      %1319 = vmatprep.subr.mxu0 0.0
      %1320 = vmatpush1.msra.mxu0 0.0
      %1321 = vmatprep.subr.mxu0 0.0
      %1322 = vmatpush1.msra.mxu0 %v1287
      %1323 = vmatprep.subr.mxu0 0.0
      %1324 = vmatpush1.msra.mxu0 %v1286
      %1325 = vmatprep.subr.mxu0 0.0
      %1326 = vmatpush1.msra.mxu0 %v1285
      %1327 = vmatprep.subr.mxu0 0.0
      %1328 = vmatpush1.msra.mxu0 %v1284
      %1329 = vmatprep.subr.mxu0 0.0
      %1330 = vmatpush2.msra.mxu0 0.0
      %1331 = vmatprep.subr.mxu0 0.0
      %1332 = vmatpush2.msra.mxu0 0.0
      %1333 = vmatprep.subr.mxu0 0.0
      %1334 = vmatpush2.msra.mxu0 0.0
      %1335 = vmatprep.subr.mxu0 0.0
      %1336 = vmatpush2.msra.mxu0 0.0
      %1337 = vmatprep.subr.mxu0 0.0
      %1338 = vmatpush2.msra.mxu0 0.0
      %1339 = vmatprep.subr.mxu0 0.0
      %1340 = vmatpush2.msra.mxu0 0.0
      %1341 = vmatprep.subr.mxu0 0.0
      %1342 = vmatpush2.msra.mxu0 0.0
      %1343 = vmatprep.subr.mxu0 0.0
      %1344 = vmatpush2.msra.mxu0 0.0
      %1345 = vmatprep.subr.mxu0 0.0
      %1346 = vmatpush2.msra.mxu0 0.0
      %1347 = vmatprep.subr.mxu0 0.0
      %1348 = vmatpush2.msra.mxu0 0.0
      %1349 = vmatprep.subr.mxu0 0.0
      %1350 = vmatpush2.msra.mxu0 0.0
      %1351 = vmatprep.subr.mxu0 0.0
      %1352 = vmatpush2.msra.mxu0 0.0
      %1353 = vmatprep.subr.mxu0 0.0
      %1354 = vmatpush2.msra.mxu0 0.0
      %1355 = vmatprep.subr.mxu0 0.0
      %1356 = vmatpush2.msra.mxu0 0.0
      %1357 = vmatprep.subr.mxu0 0.0
      %1358 = vmatpush2.msra.mxu0 0.0
      %1359 = vmatprep.subr.mxu0 0.0
      %1360 = vmatpush2.msra.mxu0 0.0
      %1361 = vmatprep.mubr.f32.mxu0 0.0
      %1362 = vmatmul.mubr.f32.gmra.mxu0 %v1295
      %v1363 = vpop.f32.mrf.mxu0
      %v1364 = vadd.f32 %v1293, %v1363
      %v1365 = vpop.f32.mrf.mxu0
      %1366 = vdwg.mxu0
      %1367 = vst [vmem:[#allocation13] sm:$0x3] %v1364
    $region49: #{tpu_custom_call.1} parent=1 // pred_fallthru
      _
    // Predicated region
    $region50: #{tpu_custom_call.1} parent=1 // pred_check
      _
    $region51: #{tpu_custom_call.1} parent=1 // pred_check_branch
      %1369 = sbr.rel (0) target = $region53
    $region52: #{tpu_custom_call.1} parent=1 // pred_region
      %s1371 = ssub.s32 32, 32
      %1372 = vsyncadd [#allocation7], %s1371
      %s1374 = sshll.u32 [#allocation13], 4
      %s1375 = int_to_ptr.vmem [resolvable:$true] %s1374
      %1377 = dma.vmem_to_hbm [thread:$0]  %s1375, 32, %s6, [#allocation7]
    $region53: #{tpu_custom_call.1} parent=1 // pred_fallthru
      _
    // Predicated region
    $region54: #{tpu_custom_call.1} parent=1 // pred_check
      _
    $region55: #{tpu_custom_call.1} parent=1 // pred_check_branch
      %1379 = sbr.rel (0) target = $region57
    $region56: #{tpu_custom_call.1} parent=1 // pred_region
      %1380 = dma.done [#allocation7], 32
    $region57: #{tpu_custom_call.1} parent=1 // pred_fallthru
      _
    %1381 = vsyncpa [#allocation6], 1
    %1382 = vsyncpa [#allocation9], 1
    %1383 = vsyncpa [#allocation12], 1
    %1384 = vsyncpa [#allocation7], 1

</llo_original>
